<compile_context>
chip_gen: v5e
topology: v5e:2x2
jax: 0.10.0
libtpu: 0.0.40
codegen_flags: <defaults>
</compile_context>

<pallas_src>
import functools

import jax
import jax.numpy as jnp
from jax import lax
from jax.experimental import pallas as pl
from jax.experimental.pallas import tpu as pltpu


_VMEM = pl.BlockSpec(memory_space=pltpu.MemorySpace.VMEM)


# ------------------------------ Pallas kernels -------------------------------

def _mm_bias_kernel(w_ref, p_ref, b_ref, o_ref, *, relu):
    """o[Co, M] = w[Co, K] @ p[K, M] + b[Co, 1]   (optional ReLU).

    Output is lane-dense along M = B*Ho*Wo, avoiding the masked 4/1-wide stores a
    (M, Cout) layout would produce.  At these tiny shapes one full-array block is
    optimal; at large batch tile M and mark that grid axis "parallel".
    """
    acc = jnp.dot(w_ref[...], p_ref[...], preferred_element_type=jnp.float32)
    acc = acc + b_ref[...]
    if relu:
        acc = jnp.maximum(acc, 0.0)
    o_ref[...] = acc.astype(o_ref.dtype)


def pallas_matmul_bias(w, p, b, relu=False):
    co = w.shape[0]
    m = p.shape[1]
    return pl.pallas_call(
        functools.partial(_mm_bias_kernel, relu=relu),
        in_specs=[_VMEM, _VMEM, _VMEM],
        out_specs=_VMEM,
        out_shape=jax.ShapeDtypeStruct((co, m), jnp.float32),
    )(w, p, b)


def _dense_fused_kernel(feat_ref, eps_ref,
                        ye1_w, ye1_b, ye2_w, ye2_b,
                        zm_w, zm_b, zv_w, zv_b,
                        yd1_w, yd1_b, yd2_w, yd2_b,
                        zd_w, zd_b,
                        y_pred_ref, z_mean_ref, log_z_var_ref, dec_ref):
    """Entire dense section in one kernel: y-encoder, z heads, reparameterization
    sample, softmax, y-decoder, z-decoder + add.  Everything stays in VMEM."""
    f32 = jnp.float32
    feat = feat_ref[...]

    h1 = jnp.maximum(
        jnp.dot(feat, ye1_w[...], preferred_element_type=f32) + ye1_b[...], 0.0)
    y_pred = jnp.dot(h1, ye2_w[...], preferred_element_type=f32) + ye2_b[...]
    z_mean = jnp.dot(feat, zm_w[...], preferred_element_type=f32) + zm_b[...]
    log_z_var = jnp.dot(feat, zv_w[...], preferred_element_type=f32) + zv_b[...]

    # reparameterization: z = mean + exp(0.5 * logvar) * eps
    z = z_mean + jnp.exp(0.5 * log_z_var) * eps_ref[...]

    # softmax over classes (f32 VPU/EUP path — v5e has no bf16 elementwise)
    m = jnp.max(y_pred, axis=-1, keepdims=True)
    e = jnp.exp(y_pred - m)
    y_soft = e / jnp.sum(e, axis=-1, keepdims=True)

    yd = jnp.maximum(
        jnp.dot(y_soft, yd1_w[...], preferred_element_type=f32) + yd1_b[...], 0.0)
    yd = jnp.maximum(
        jnp.dot(yd, yd2_w[...], preferred_element_type=f32) + yd2_b[...], 0.0)
    dec = jnp.dot(z, zd_w[...], preferred_element_type=f32) + zd_b[...] + yd

    y_pred_ref[...] = y_pred.astype(y_pred_ref.dtype)
    z_mean_ref[...] = z_mean.astype(z_mean_ref.dtype)
    log_z_var_ref[...] = log_z_var.astype(log_z_var_ref.dtype)
    dec_ref[...] = dec.astype(dec_ref.dtype)


def pallas_dense_fused(feat, eps, p):
    B = feat.shape[0]
    out_size = p["ye2_w"].shape[1]
    latent = p["zm_w"].shape[1]
    enc = p["zd_w"].shape[1]
    args = (
        feat, eps,
        p["ye1_w"], p["ye1_b"].reshape(1, -1),
        p["ye2_w"], p["ye2_b"].reshape(1, -1),
        p["zm_w"], p["zm_b"].reshape(1, -1),
        p["zv_w"], p["zv_b"].reshape(1, -1),
        p["yd1_w"], p["yd1_b"].reshape(1, -1),
        p["yd2_w"], p["yd2_b"].reshape(1, -1),
        p["zd_w"], p["zd_b"].reshape(1, -1),
    )
    return pl.pallas_call(
        _dense_fused_kernel,
        in_specs=[_VMEM] * len(args),
        out_specs=(_VMEM, _VMEM, _VMEM, _VMEM),
        out_shape=(
            jax.ShapeDtypeStruct((B, out_size), jnp.float32),
            jax.ShapeDtypeStruct((B, latent), jnp.float32),
            jax.ShapeDtypeStruct((B, latent), jnp.float32),
            jax.ShapeDtypeStruct((B, enc), jnp.float32),
        ),
    )(*args)


# ----------------------- conv glue (channel-major CBHW) -----------------------
# TODO(synk): patch extraction (pad + k*k strided slices + stack) stays in plain
# JAX; an in-kernel strided-`pl.ds` im2col would remove the remaining XLA glue.

def _im2col_T(x_cbhw, k, stride, pad):
    """x: (C, B, H, W) -> patchesT (C*k*k, B*Ho*Wo).
    Row order (c, kh, kw) matches torch_weight.reshape(Cout, -1) columns;
    column order is (b, ho, wo)."""
    C, B, H, W = x_cbhw.shape
    xp = jnp.pad(x_cbhw, ((0, 0), (0, 0), (pad, pad), (pad, pad)))
    Ho = (H + 2 * pad - k) // stride + 1
    Wo = (W + 2 * pad - k) // stride + 1
    taps = []
    for kh in range(k):
        for kw in range(k):
            taps.append(xp[:, :, kh:kh + stride * (Ho - 1) + 1:stride,
                              kw:kw + stride * (Wo - 1) + 1:stride])
    p = jnp.stack(taps, axis=1)                       # (C, k*k, B, Ho, Wo)
    return p.reshape(C * k * k, B * Ho * Wo), Ho, Wo


def conv2d_cbhw(x_cbhw, w, b, stride, pad, relu):
    """Conv2d on channel-major (Cin, B, H, W); returns (Cout, B, Ho, Wo)."""
    Co, _, k, _ = w.shape
    B = x_cbhw.shape[1]
    patches, Ho, Wo = _im2col_T(x_cbhw, k, stride, pad)
    y = pallas_matmul_bias(w.reshape(Co, -1), patches, b.reshape(Co, 1), relu)
    return y.reshape(Co, B, Ho, Wo)


def _deconv_phase_weights(wT):
    """ConvTranspose2d weight (Cin, Cout, 4, 4) -> polyphase matrix (4*Cout, Cin*9).

    For stride=2, k=4, pad=1 each output pixel (2i+r, 2j+c) receives exactly a 2x2
    set of taps from the un-dilated input; expressed against 3x3/stride-1 patches of
    the 1-padded input, the per-phase kernel rows are
        r=0 -> (kh=3, kh=1, unused),   r=1 -> (unused, kh=2, kh=0)   (same for kw).
    """
    Cin, Cout = wT.shape[0], wT.shape[1]
    wz = jnp.pad(wT, ((0, 0), (0, 0), (0, 1), (0, 1)))        # index 4 == zero tap
    idx = jnp.array([[3, 1, 4], [4, 2, 0]], dtype=jnp.int32)   # [phase, tap]
    sel = wz[:, :, idx, :]                                     # (Cin, Cout, 2, 3, 5)
    sel = sel[:, :, :, :, idx]                                 # (Cin, Cout, 2,3, 2,3)
    wp = jnp.transpose(sel, (2, 4, 1, 0, 3, 5))                # (r, c, Cout, Cin, 3, 3)
    return wp.reshape(4 * Cout, Cin * 9)


def conv_transpose2d_cbhw(x_cbhw, wT, b, relu):
    """ConvTranspose2d(k=4, stride=2, pad=1) on (Cin, B, H, W) -> (Cout, B, 2H, 2W).
    Polyphase: one lane-dense matmul on 3x3 patches + pixel shuffle."""
    Cin, B, H, W = x_cbhw.shape
    Cout = wT.shape[1]
    patches, _, _ = _im2col_T(x_cbhw, 3, 1, 1)                 # (Cin*9, B*H*W)
    wmat = _deconv_phase_weights(wT)                            # (4*Cout, Cin*9)
    bmat = jnp.tile(b, 4).reshape(4 * Cout, 1)
    y = pallas_matmul_bias(wmat, patches, bmat, relu)           # (4*Cout, B*H*W)
    y = y.reshape(2, 2, Cout, B, H, W)                          # [r, c, co, b, i, j]
    y = jnp.transpose(y, (2, 3, 4, 0, 5, 1))                    # (co, b, i, r, j, c)
    return y.reshape(Cout, B, 2 * H, 2 * W)


# -------------------------------- parameters ---------------------------------

def _init_linear(key, in_dim, out_dim):
    kw, kb = jax.random.split(key)
    bound = 1.0 / (in_dim ** 0.5)
    w = jax.random.uniform(kw, (in_dim, out_dim), jnp.float32, -bound, bound)
    b = jax.random.uniform(kb, (out_dim,), jnp.float32, -bound, bound)
    return w, b


def _init_conv(key, cout, cin, k):
    kw, kb = jax.random.split(key)
    bound = 1.0 / ((cin * k * k) ** 0.5)
    w = jax.random.uniform(kw, (cout, cin, k, k), jnp.float32, -bound, bound)
    b = jax.random.uniform(kb, (cout,), jnp.float32, -bound, bound)
    return w, b


def _init_deconv(key, cin, cout, k):
    # torch ConvTranspose2d layout (Cin, Cout, k, k); bias size derived from Cout.
    kw, kb = jax.random.split(key)
    bound = 1.0 / ((cout * k * k) ** 0.5)
    w = jax.random.uniform(kw, (cin, cout, k, k), jnp.float32, -bound, bound)
    b = jax.random.uniform(kb, (cout,), jnp.float32, -bound, bound)
    return w, b


def init_vae_params(key, num_filters, output_size, num_latent_var):
    enc_out = num_filters * 7 * 7
    keys = jax.random.split(key, 11)
    p = {}
    p["conv1_w"], p["conv1_b"] = _init_conv(keys[0], num_filters, 1, 4)
    p["conv2_w"], p["conv2_b"] = _init_conv(keys[1], num_filters, num_filters, 4)
    p["ye1_w"], p["ye1_b"] = _init_linear(keys[2], enc_out, 128)
    p["ye2_w"], p["ye2_b"] = _init_linear(keys[3], 128, output_size)
    p["zm_w"], p["zm_b"] = _init_linear(keys[4], enc_out, num_latent_var)
    p["zv_w"], p["zv_b"] = _init_linear(keys[5], enc_out, num_latent_var)
    p["yd1_w"], p["yd1_b"] = _init_linear(keys[6], output_size, 128)
    p["yd2_w"], p["yd2_b"] = _init_linear(keys[7], 128, enc_out)
    p["zd_w"], p["zd_b"] = _init_linear(keys[8], num_latent_var, enc_out)
    p["dc1_w"], p["dc1_b"] = _init_deconv(keys[9], num_filters, num_filters, 4)
    p["dc2_w"], p["dc2_b"] = _init_deconv(keys[10], num_filters, 1, 4)
    return p


# ---------------------------------- forward ----------------------------------

def vae_forward(params, x, eps):
    """x: (B, 1, 28, 28) NCHW float32; eps: (B, num_latent_var)."""
    B = x.shape[0]
    F = params["conv1_w"].shape[0]

    # input_encoder (activations kept channel-major CBHW between the convs)
    xc = jnp.transpose(x, (1, 0, 2, 3))                           # (1, B, 28, 28)
    h = conv2d_cbhw(xc, params["conv1_w"], params["conv1_b"], 2, 1, relu=True)
    h = conv2d_cbhw(h, params["conv2_w"], params["conv2_b"], 2, 1, relu=True)
    feat = jnp.transpose(h, (1, 0, 2, 3)).reshape(B, -1)          # torch NCHW flatten

    # fused dense section: y-encoder, z heads, sample, softmax, y/z decoders
    y_pred, z_mean, log_z_var, dec = pallas_dense_fused(feat, eps, params)

    # output_decoder
    d = jnp.transpose(dec.reshape(B, F, 7, 7), (1, 0, 2, 3))      # (F, B, 7, 7)
    d = conv_transpose2d_cbhw(d, params["dc1_w"], params["dc1_b"], relu=True)
    d = conv_transpose2d_cbhw(d, params["dc2_w"], params["dc2_b"], relu=False)
    x_hat = jnp.transpose(d, (1, 0, 2, 3))                        # (B, 1, 28, 28)
    return x_hat, z_mean, log_z_var, y_pred


# ------------------------- pure-JAX reference (check) -------------------------

def _ref_conv(x, w, b, stride, pad):
    y = lax.conv_general_dilated(x, w, (stride, stride), [(pad, pad), (pad, pad)],
                                 dimension_numbers=("NCHW", "OIHW", "NCHW"))
    return y + b.reshape(1, -1, 1, 1)


def _ref_deconv(x, wT, b, stride, pad):
    k = wT.shape[2]
    w = jnp.transpose(jnp.flip(wT, (2, 3)), (1, 0, 2, 3))
    y = lax.conv_general_dilated(x, w, (1, 1), [(k - 1 - pad, k - 1 - pad)] * 2,
                                 lhs_dilation=(stride, stride),
                                 dimension_numbers=("NCHW", "OIHW", "NCHW"))
    return y + b.reshape(1, -1, 1, 1)


def vae_forward_ref(params, x, eps):
    B = x.shape[0]
    F = params["conv1_w"].shape[0]
    h = jax.nn.relu(_ref_conv(x, params["conv1_w"], params["conv1_b"], 2, 1))
    h = jax.nn.relu(_ref_conv(h, params["conv2_w"], params["conv2_b"], 2, 1))
    feat = h.reshape(B, -1)
    h1 = jax.nn.relu(feat @ params["ye1_w"] + params["ye1_b"])
    y_pred = h1 @ params["ye2_w"] + params["ye2_b"]
    z_mean = feat @ params["zm_w"] + params["zm_b"]
    log_z_var = feat @ params["zv_w"] + params["zv_b"]
    z = z_mean + jnp.exp(0.5 * log_z_var) * eps
    y_soft = jax.nn.softmax(y_pred, axis=-1)
    yd = jax.nn.relu(y_soft @ params["yd1_w"] + params["yd1_b"])
    yd = jax.nn.relu(yd @ params["yd2_w"] + params["yd2_b"])
    dec = z @ params["zd_w"] + params["zd_b"] + yd
    d = dec.reshape(B, F, 7, 7)
    d = jax.nn.relu(_ref_deconv(d, params["dc1_w"], params["dc1_b"], 2, 1))
    x_hat = _ref_deconv(d, params["dc2_w"], params["dc2_b"], 2, 1)
    return x_hat, z_mean, log_z_var, y_pred


# ------------------------------------ main ------------------------------------

if __name__ == "__main__":
    # Module hyper-params (spatial 28x28 is fixed by the 7x7 encoder output dim)
    num_filters, output_size, num_latent_var = 4, 10, 8
    B = 2

    root = jax.random.PRNGKey(0)
    k_params, k_x, k_eps = jax.random.split(root, 3)

    params = init_vae_params(k_params, num_filters, output_size, num_latent_var)
    x = jax.random.normal(k_x, (B, 1, 28, 28), jnp.float32)
    # TODO(synk): torch's .normal_() RNG stream has no bit-exact JAX equivalent;
    # epsilon is drawn deterministically with jax.random instead.
    eps = jax.random.normal(k_eps, (B, num_latent_var), jnp.float32)

    fwd = jax.jit(vae_forward)
    x_hat, z_mean, log_z_var, y_pred = jax.block_until_ready(fwd(params, x, eps))

    assert x_hat.shape == (B, 1, 28, 28)
    assert z_mean.shape == (B, num_latent_var)
    assert log_z_var.shape == (B, num_latent_var)
    assert y_pred.shape == (B, output_size)

    # correctness check against a pure-JAX (lax.conv) reference of the same module
    r_xh, r_zm, r_lv, r_yp = jax.jit(vae_forward_ref)(params, x, eps)
    for got, ref in ((x_hat, r_xh), (z_mean, r_zm), (log_z_var, r_lv), (y_pred, r_yp)):
        assert jnp.allclose(got, ref, rtol=2e-2, atol=2e-2), \
            float(jnp.max(jnp.abs(got - ref)))

    print("KERNEL_OK")
</pallas_src>

<mosaic_0001>
module attributes {stable_mosaic.version = 11 : i64} {
  func.func @_mm_bias_kernel(%arg0: memref<4x16xf32, #tpu.memory_space<vmem>>, %arg1: memref<16x392xf32, #tpu.memory_space<vmem>>, %arg2: memref<4x1xf32, #tpu.memory_space<vmem>>, %arg3: memref<4x392xf32, #tpu.memory_space<vmem>>) attributes {dimension_semantics = [], scalar_prefetch = 0 : i64, scratch_operands = 0 : i64, tpu.core_type = #tpu.core_type<tc>} {
    %c0 = arith.constant 0 : index
    %c0_0 = arith.constant 0 : index
    %0 = vector.load %arg0[%c0, %c0_0] : memref<4x16xf32, #tpu.memory_space<vmem>>, vector<4x16xf32>
    %c0_1 = arith.constant 0 : index
    %c0_2 = arith.constant 0 : index
    %1 = vector.load %arg1[%c0_1, %c0_2] : memref<16x392xf32, #tpu.memory_space<vmem>>, vector<16x392xf32>
    %cst = arith.constant dense<0.000000e+00> : vector<4x392xf32>
    %2 = tpu.matmul %0, %1, %cst {dimension_numbers = #tpu.dot_dimension_numbers<[1], [0], [0], [1], [0, 0, 1, 1], [], []>} : vector<4x16xf32>, vector<16x392xf32>, vector<4x392xf32> -> vector<4x392xf32>
    %c0_3 = arith.constant 0 : index
    %c0_4 = arith.constant 0 : index
    %3 = vector.load %arg2[%c0_3, %c0_4] : memref<4x1xf32, #tpu.memory_space<vmem>>, vector<4x1xf32>
    %4 = vector.broadcast %3 : vector<4x1xf32> to vector<4x392xf32>
    %5 = arith.addf %2, %4 : vector<4x392xf32>
    %cst_5 = arith.constant 0.000000e+00 : f32
    %6 = vector.broadcast %cst_5 : f32 to vector<4x392xf32>
    %7 = arith.maximumf %5, %6 : vector<4x392xf32>
    %c0_6 = arith.constant 0 : index
    %c0_7 = arith.constant 0 : index
    %8 = vector.load %arg3[%c0_6, %c0_7] : memref<4x392xf32, #tpu.memory_space<vmem>>, vector<4x392xf32>
    tpu.vector_store %arg3[%c0_6, %c0_7], %7 {strides = array<i32>} : memref<4x392xf32, #tpu.memory_space<vmem>>, vector<4x392xf32>,
    return
  }
}

module attributes {stable_mosaic.version = 11 : i64} {
  func.func @_mm_bias_kernel(%arg0: memref<4x64xf32, #tpu.memory_space<vmem>>, %arg1: memref<64x98xf32, #tpu.memory_space<vmem>>, %arg2: memref<4x1xf32, #tpu.memory_space<vmem>>, %arg3: memref<4x98xf32, #tpu.memory_space<vmem>>) attributes {dimension_semantics = [], scalar_prefetch = 0 : i64, scratch_operands = 0 : i64, tpu.core_type = #tpu.core_type<tc>} {
    %c0 = arith.constant 0 : index
    %c0_0 = arith.constant 0 : index
    %0 = vector.load %arg0[%c0, %c0_0] : memref<4x64xf32, #tpu.memory_space<vmem>>, vector<4x64xf32>
    %c0_1 = arith.constant 0 : index
    %c0_2 = arith.constant 0 : index
    %1 = vector.load %arg1[%c0_1, %c0_2] : memref<64x98xf32, #tpu.memory_space<vmem>>, vector<64x98xf32>
    %cst = arith.constant dense<0.000000e+00> : vector<4x98xf32>
    %2 = tpu.matmul %0, %1, %cst {dimension_numbers = #tpu.dot_dimension_numbers<[1], [0], [0], [1], [0, 0, 1, 1], [], []>} : vector<4x64xf32>, vector<64x98xf32>, vector<4x98xf32> -> vector<4x98xf32>
    %c0_3 = arith.constant 0 : index
    %c0_4 = arith.constant 0 : index
    %3 = vector.load %arg2[%c0_3, %c0_4] : memref<4x1xf32, #tpu.memory_space<vmem>>, vector<4x1xf32>
    %4 = vector.broadcast %3 : vector<4x1xf32> to vector<4x98xf32>
    %5 = arith.addf %2, %4 : vector<4x98xf32>
    %cst_5 = arith.constant 0.000000e+00 : f32
    %6 = vector.broadcast %cst_5 : f32 to vector<4x98xf32>
    %7 = arith.maximumf %5, %6 : vector<4x98xf32>
    %c0_6 = arith.constant 0 : index
    %c0_7 = arith.constant 0 : index
    %8 = vector.load %arg3[%c0_6, %c0_7] : memref<4x98xf32, #tpu.memory_space<vmem>>, vector<4x98xf32>
    tpu.vector_store %arg3[%c0_6, %c0_7], %7 {strides = array<i32>} : memref<4x98xf32, #tpu.memory_space<vmem>>, vector<4x98xf32>,
    return
  }
}

module attributes {stable_mosaic.version = 11 : i64} {
  func.func @_dense_fused_kernel(%arg0: memref<2x196xf32, #tpu.memory_space<vmem>>, %arg1: memref<2x8xf32, #tpu.memory_space<vmem>>, %arg2: memref<196x128xf32, #tpu.memory_space<vmem>>, %arg3: memref<1x128xf32, #tpu.memory_space<vmem>>, %arg4: memref<128x10xf32, #tpu.memory_space<vmem>>, %arg5: memref<1x10xf32, #tpu.memory_space<vmem>>, %arg6: memref<196x8xf32, #tpu.memory_space<vmem>>, %arg7: memref<1x8xf32, #tpu.memory_space<vmem>>, %arg8: memref<196x8xf32, #tpu.memory_space<vmem>>, %arg9: memref<1x8xf32, #tpu.memory_space<vmem>>, %arg10: memref<10x128xf32, #tpu.memory_space<vmem>>, %arg11: memref<1x128xf32, #tpu.memory_space<vmem>>, %arg12: memref<128x196xf32, #tpu.memory_space<vmem>>, %arg13: memref<1x196xf32, #tpu.memory_space<vmem>>, %arg14: memref<8x196xf32, #tpu.memory_space<vmem>>, %arg15: memref<1x196xf32, #tpu.memory_space<vmem>>, %arg16: memref<2x10xf32, #tpu.memory_space<vmem>>, %arg17: memref<2x8xf32, #tpu.memory_space<vmem>>, %arg18: memref<2x8xf32, #tpu.memory_space<vmem>>, %arg19: memref<2x196xf32, #tpu.memory_space<vmem>>) attributes {dimension_semantics = [], scalar_prefetch = 0 : i64, scratch_operands = 0 : i64, tpu.core_type = #tpu.core_type<tc>} {
    %c0 = arith.constant 0 : index
    %c0_0 = arith.constant 0 : index
    %0 = vector.load %arg0[%c0, %c0_0] : memref<2x196xf32, #tpu.memory_space<vmem>>, vector<2x196xf32>
    %c0_1 = arith.constant 0 : index
    %c0_2 = arith.constant 0 : index
    %1 = vector.load %arg2[%c0_1, %c0_2] : memref<196x128xf32, #tpu.memory_space<vmem>>, vector<196x128xf32>
    %cst = arith.constant dense<0.000000e+00> : vector<2x128xf32>
    %2 = tpu.matmul %0, %1, %cst {dimension_numbers = #tpu.dot_dimension_numbers<[1], [0], [0], [1], [0, 0, 1, 1], [], []>} : vector<2x196xf32>, vector<196x128xf32>, vector<2x128xf32> -> vector<2x128xf32>
    %c0_3 = arith.constant 0 : index
    %c0_4 = arith.constant 0 : index
    %3 = vector.load %arg3[%c0_3, %c0_4] : memref<1x128xf32, #tpu.memory_space<vmem>>, vector<1x128xf32>
    %4 = vector.broadcast %3 : vector<1x128xf32> to vector<2x128xf32>
    %5 = arith.addf %2, %4 : vector<2x128xf32>
    %cst_5 = arith.constant 0.000000e+00 : f32
    %6 = vector.broadcast %cst_5 : f32 to vector<2x128xf32>
    %7 = arith.maximumf %5, %6 : vector<2x128xf32>
    %c0_6 = arith.constant 0 : index
    %c0_7 = arith.constant 0 : index
    %8 = vector.load %arg4[%c0_6, %c0_7] : memref<128x10xf32, #tpu.memory_space<vmem>>, vector<128x10xf32>
    %cst_8 = arith.constant dense<0.000000e+00> : vector<2x10xf32>
    %9 = tpu.matmul %7, %8, %cst_8 {dimension_numbers = #tpu.dot_dimension_numbers<[1], [0], [0], [1], [0, 0, 1, 1], [], []>} : vector<2x128xf32>, vector<128x10xf32>, vector<2x10xf32> -> vector<2x10xf32>
    %c0_9 = arith.constant 0 : index
    %c0_10 = arith.constant 0 : index
    %10 = vector.load %arg5[%c0_9, %c0_10] : memref<1x10xf32, #tpu.memory_space<vmem>>, vector<1x10xf32>
    %11 = vector.broadcast %10 : vector<1x10xf32> to vector<2x10xf32>
    %12 = arith.addf %9, %11 : vector<2x10xf32>
    %c0_11 = arith.constant 0 : index
    %c0_12 = arith.constant 0 : index
    %13 = vector.load %arg6[%c0_11, %c0_12] : memref<196x8xf32, #tpu.memory_space<vmem>>, vector<196x8xf32>
    %cst_13 = arith.constant dense<0.000000e+00> : vector<2x8xf32>
    %14 = tpu.matmul %0, %13, %cst_13 {dimension_numbers = #tpu.dot_dimension_numbers<[1], [0], [0], [1], [0, 0, 1, 1], [], []>} : vector<2x196xf32>, vector<196x8xf32>, vector<2x8xf32> -> vector<2x8xf32>
    %c0_14 = arith.constant 0 : index
    %c0_15 = arith.constant 0 : index
    %15 = vector.load %arg7[%c0_14, %c0_15] : memref<1x8xf32, #tpu.memory_space<vmem>>, vector<1x8xf32>
    %16 = vector.broadcast %15 : vector<1x8xf32> to vector<2x8xf32>
    %17 = arith.addf %14, %16 : vector<2x8xf32>
    %c0_16 = arith.constant 0 : index
    %c0_17 = arith.constant 0 : index
    %18 = vector.load %arg8[%c0_16, %c0_17] : memref<196x8xf32, #tpu.memory_space<vmem>>, vector<196x8xf32>
    %cst_18 = arith.constant dense<0.000000e+00> : vector<2x8xf32>
    %19 = tpu.matmul %0, %18, %cst_18 {dimension_numbers = #tpu.dot_dimension_numbers<[1], [0], [0], [1], [0, 0, 1, 1], [], []>} : vector<2x196xf32>, vector<196x8xf32>, vector<2x8xf32> -> vector<2x8xf32>
    %c0_19 = arith.constant 0 : index
    %c0_20 = arith.constant 0 : index
    %20 = vector.load %arg9[%c0_19, %c0_20] : memref<1x8xf32, #tpu.memory_space<vmem>>, vector<1x8xf32>
    %21 = vector.broadcast %20 : vector<1x8xf32> to vector<2x8xf32>
    %22 = arith.addf %19, %21 : vector<2x8xf32>
    %cst_21 = arith.constant 5.000000e-01 : f32
    %23 = vector.broadcast %cst_21 : f32 to vector<2x8xf32>
    %24 = arith.mulf %23, %22 : vector<2x8xf32>
    %25 = math.exp %24 : vector<2x8xf32>
    %c0_22 = arith.constant 0 : index
    %c0_23 = arith.constant 0 : index
    %26 = vector.load %arg1[%c0_22, %c0_23] : memref<2x8xf32, #tpu.memory_space<vmem>>, vector<2x8xf32>
    %27 = arith.mulf %25, %26 : vector<2x8xf32>
    %28 = arith.addf %17, %27 : vector<2x8xf32>
    %cst_24 = arith.constant dense<0xFF800000> : vector<2xf32>
    %29 = vector.multi_reduction <maximumf>, %12, %cst_24 [1] : vector<2x10xf32> to vector<2xf32>
    %30 = vector.shape_cast %29 : vector<2xf32> to vector<2x1xf32>
    %31 = vector.broadcast %30 : vector<2x1xf32> to vector<2x10xf32>
    %32 = arith.subf %12, %31 : vector<2x10xf32>
    %33 = math.exp %32 : vector<2x10xf32>
    %cst_25 = arith.constant dense<0.000000e+00> : vector<2xf32>
    %34 = vector.multi_reduction <add>, %33, %cst_25 [1] : vector<2x10xf32> to vector<2xf32>
    %35 = vector.shape_cast %34 : vector<2xf32> to vector<2x1xf32>
    %36 = vector.broadcast %35 : vector<2x1xf32> to vector<2x10xf32>
    %37 = arith.divf %33, %36 : vector<2x10xf32>
    %c0_26 = arith.constant 0 : index
    %c0_27 = arith.constant 0 : index
    %38 = vector.load %arg10[%c0_26, %c0_27] : memref<10x128xf32, #tpu.memory_space<vmem>>, vector<10x128xf32>
    %cst_28 = arith.constant dense<0.000000e+00> : vector<2x128xf32>
    %39 = tpu.matmul %37, %38, %cst_28 {dimension_numbers = #tpu.dot_dimension_numbers<[1], [0], [0], [1], [0, 0, 1, 1], [], []>} : vector<2x10xf32>, vector<10x128xf32>, vector<2x128xf32> -> vector<2x128xf32>
    %c0_29 = arith.constant 0 : index
    %c0_30 = arith.constant 0 : index
    %40 = vector.load %arg11[%c0_29, %c0_30] : memref<1x128xf32, #tpu.memory_space<vmem>>, vector<1x128xf32>
    %41 = vector.broadcast %40 : vector<1x128xf32> to vector<2x128xf32>
    %42 = arith.addf %39, %41 : vector<2x128xf32>
    %cst_31 = arith.constant 0.000000e+00 : f32
    %43 = vector.broadcast %cst_31 : f32 to vector<2x128xf32>
    %44 = arith.maximumf %42, %43 : vector<2x128xf32>
    %c0_32 = arith.constant 0 : index
    %c0_33 = arith.constant 0 : index
    %45 = vector.load %arg12[%c0_32, %c0_33] : memref<128x196xf32, #tpu.memory_space<vmem>>, vector<128x196xf32>
    %cst_34 = arith.constant dense<0.000000e+00> : vector<2x196xf32>
    %46 = tpu.matmul %44, %45, %cst_34 {dimension_numbers = #tpu.dot_dimension_numbers<[1], [0], [0], [1], [0, 0, 1, 1], [], []>} : vector<2x128xf32>, vector<128x196xf32>, vector<2x196xf32> -> vector<2x196xf32>
    %c0_35 = arith.constant 0 : index
    %c0_36 = arith.constant 0 : index
    %47 = vector.load %arg13[%c0_35, %c0_36] : memref<1x196xf32, #tpu.memory_space<vmem>>, vector<1x196xf32>
    %48 = vector.broadcast %47 : vector<1x196xf32> to vector<2x196xf32>
    %49 = arith.addf %46, %48 : vector<2x196xf32>
    %cst_37 = arith.constant 0.000000e+00 : f32
    %50 = vector.broadcast %cst_37 : f32 to vector<2x196xf32>
    %51 = arith.maximumf %49, %50 : vector<2x196xf32>
    %c0_38 = arith.constant 0 : index
    %c0_39 = arith.constant 0 : index
    %52 = vector.load %arg14[%c0_38, %c0_39] : memref<8x196xf32, #tpu.memory_space<vmem>>, vector<8x196xf32>
    %cst_40 = arith.constant dense<0.000000e+00> : vector<2x196xf32>
    %53 = tpu.matmul %28, %52, %cst_40 {dimension_numbers = #tpu.dot_dimension_numbers<[1], [0], [0], [1], [0, 0, 1, 1], [], []>} : vector<2x8xf32>, vector<8x196xf32>, vector<2x196xf32> -> vector<2x196xf32>
    %c0_41 = arith.constant 0 : index
    %c0_42 = arith.constant 0 : index
    %54 = vector.load %arg15[%c0_41, %c0_42] : memref<1x196xf32, #tpu.memory_space<vmem>>, vector<1x196xf32>
    %55 = vector.broadcast %54 : vector<1x196xf32> to vector<2x196xf32>
    %56 = arith.addf %53, %55 : vector<2x196xf32>
    %57 = arith.addf %56, %51 : vector<2x196xf32>
    %c0_43 = arith.constant 0 : index
    %c0_44 = arith.constant 0 : index
    %58 = vector.load %arg16[%c0_43, %c0_44] : memref<2x10xf32, #tpu.memory_space<vmem>>, vector<2x10xf32>
    tpu.vector_store %arg16[%c0_43, %c0_44], %12 {strides = array<i32>} : memref<2x10xf32, #tpu.memory_space<vmem>>, vector<2x10xf32>,
    %c0_45 = arith.constant 0 : index
    %c0_46 = arith.constant 0 : index
    %59 = vector.load %arg17[%c0_45, %c0_46] : memref<2x8xf32, #tpu.memory_space<vmem>>, vector<2x8xf32>
    tpu.vector_store %arg17[%c0_45, %c0_46], %17 {strides = array<i32>} : memref<2x8xf32, #tpu.memory_space<vmem>>, vector<2x8xf32>,
    %c0_47 = arith.constant 0 : index
    %c0_48 = arith.constant 0 : index
    %60 = vector.load %arg18[%c0_47, %c0_48] : memref<2x8xf32, #tpu.memory_space<vmem>>, vector<2x8xf32>
    tpu.vector_store %arg18[%c0_47, %c0_48], %22 {strides = array<i32>} : memref<2x8xf32, #tpu.memory_space<vmem>>, vector<2x8xf32>,
    %c0_49 = arith.constant 0 : index
    %c0_50 = arith.constant 0 : index
    %61 = vector.load %arg19[%c0_49, %c0_50] : memref<2x196xf32, #tpu.memory_space<vmem>>, vector<2x196xf32>
    tpu.vector_store %arg19[%c0_49, %c0_50], %57 {strides = array<i32>} : memref<2x196xf32, #tpu.memory_space<vmem>>, vector<2x196xf32>,
    return
  }
}

module attributes {stable_mosaic.version = 11 : i64} {
  func.func @_mm_bias_kernel(%arg0: memref<16x36xf32, #tpu.memory_space<vmem>>, %arg1: memref<36x98xf32, #tpu.memory_space<vmem>>, %arg2: memref<16x1xf32, #tpu.memory_space<vmem>>, %arg3: memref<16x98xf32, #tpu.memory_space<vmem>>) attributes {dimension_semantics = [], scalar_prefetch = 0 : i64, scratch_operands = 0 : i64, tpu.core_type = #tpu.core_type<tc>} {
    %c0 = arith.constant 0 : index
    %c0_0 = arith.constant 0 : index
    %0 = vector.load %arg0[%c0, %c0_0] : memref<16x36xf32, #tpu.memory_space<vmem>>, vector<16x36xf32>
    %c0_1 = arith.constant 0 : index
    %c0_2 = arith.constant 0 : index
    %1 = vector.load %arg1[%c0_1, %c0_2] : memref<36x98xf32, #tpu.memory_space<vmem>>, vector<36x98xf32>
    %cst = arith.constant dense<0.000000e+00> : vector<16x98xf32>
    %2 = tpu.matmul %0, %1, %cst {dimension_numbers = #tpu.dot_dimension_numbers<[1], [0], [0], [1], [0, 0, 1, 1], [], []>} : vector<16x36xf32>, vector<36x98xf32>, vector<16x98xf32> -> vector<16x98xf32>
    %c0_3 = arith.constant 0 : index
    %c0_4 = arith.constant 0 : index
    %3 = vector.load %arg2[%c0_3, %c0_4] : memref<16x1xf32, #tpu.memory_space<vmem>>, vector<16x1xf32>
    %4 = vector.broadcast %3 : vector<16x1xf32> to vector<16x98xf32>
    %5 = arith.addf %2, %4 : vector<16x98xf32>
    %cst_5 = arith.constant 0.000000e+00 : f32
    %6 = vector.broadcast %cst_5 : f32 to vector<16x98xf32>
    %7 = arith.maximumf %5, %6 : vector<16x98xf32>
    %c0_6 = arith.constant 0 : index
    %c0_7 = arith.constant 0 : index
    %8 = vector.load %arg3[%c0_6, %c0_7] : memref<16x98xf32, #tpu.memory_space<vmem>>, vector<16x98xf32>
    tpu.vector_store %arg3[%c0_6, %c0_7], %7 {strides = array<i32>} : memref<16x98xf32, #tpu.memory_space<vmem>>, vector<16x98xf32>,
    return
  }
}

module attributes {stable_mosaic.version = 11 : i64} {
  func.func @_mm_bias_kernel(%arg0: memref<4x36xf32, #tpu.memory_space<vmem>>, %arg1: memref<36x392xf32, #tpu.memory_space<vmem>>, %arg2: memref<4x1xf32, #tpu.memory_space<vmem>>, %arg3: memref<4x392xf32, #tpu.memory_space<vmem>>) attributes {dimension_semantics = [], scalar_prefetch = 0 : i64, scratch_operands = 0 : i64, tpu.core_type = #tpu.core_type<tc>} {
    %c0 = arith.constant 0 : index
    %c0_0 = arith.constant 0 : index
    %0 = vector.load %arg0[%c0, %c0_0] : memref<4x36xf32, #tpu.memory_space<vmem>>, vector<4x36xf32>
    %c0_1 = arith.constant 0 : index
    %c0_2 = arith.constant 0 : index
    %1 = vector.load %arg1[%c0_1, %c0_2] : memref<36x392xf32, #tpu.memory_space<vmem>>, vector<36x392xf32>
    %cst = arith.constant dense<0.000000e+00> : vector<4x392xf32>
    %2 = tpu.matmul %0, %1, %cst {dimension_numbers = #tpu.dot_dimension_numbers<[1], [0], [0], [1], [0, 0, 1, 1], [], []>} : vector<4x36xf32>, vector<36x392xf32>, vector<4x392xf32> -> vector<4x392xf32>
    %c0_3 = arith.constant 0 : index
    %c0_4 = arith.constant 0 : index
    %3 = vector.load %arg2[%c0_3, %c0_4] : memref<4x1xf32, #tpu.memory_space<vmem>>, vector<4x1xf32>
    %4 = vector.broadcast %3 : vector<4x1xf32> to vector<4x392xf32>
    %5 = arith.addf %2, %4 : vector<4x392xf32>
    %c0_5 = arith.constant 0 : index
    %c0_6 = arith.constant 0 : index
    %6 = vector.load %arg3[%c0_5, %c0_6] : memref<4x392xf32, #tpu.memory_space<vmem>>, vector<4x392xf32>
    tpu.vector_store %arg3[%c0_5, %c0_6], %5 {strides = array<i32>} : memref<4x392xf32, #tpu.memory_space<vmem>>, vector<4x392xf32>,
    return
  }
}

</mosaic_0001>

<llo_original>
// kernel: vae_forward.5
$region0: #{vae_forward.5}
  #allocation0 [shape = 'u32[]', space=smem, size = 0x4, offset = 0x4, fixed_abs, tag = 'smem constant byte address 0x4 - core index']
  #allocation1 [shape = 'u32[72,128]{1,0:T(1,128)}', space=vmem, size = 0x9000, scoped, tag = 'internal scratch']
  %s0 = inlined_call_operand.vmem [shape: f32[4,16], index: 0, kind: input, shape index: {}]
  %s1 = inlined_call_operand.vmem [shape: f32[16,392], index: 1, kind: input, shape index: {}]
  %s2 = inlined_call_operand.vmem [shape: f32[4,1], index: 2, kind: input, shape index: {}]
  %s3 = inlined_call_operand.vmem [shape: f32[4,392], index: 3, kind: output, shape index: {}]
  %s4 = sld [smem:[#allocation0]]
  $region22: #{vae_forward.5} parent=0
    _
  %s6 = ssub.s32 1, %s4
  %s7 = scalar_select 0, %s6, %s4
  // Predicated region
  $region2: #{vae_forward.5} parent=0 // pred_check
    _
  $region3: #{vae_forward.5} parent=0 // pred_check_branch
    %9 = sbr.rel (0) target = $region5
  $region4: #{vae_forward.5} parent=0 // pred_region
    _
  $region5: #{vae_forward.5} parent=0 // pred_fallthru
    _
  // Predicated region
  $region6: #{vae_forward.5} parent=0 // pred_check
    _
  $region7: #{vae_forward.5} parent=0 // pred_check_branch
    %11 = sbr.rel (0) target = $region9
  $region8: #{vae_forward.5} parent=0 // pred_region
    _
  $region9: #{vae_forward.5} parent=0 // pred_fallthru
    _
  // Predicated region
  $region10: #{vae_forward.5} parent=0 // pred_check
    _
  $region11: #{vae_forward.5} parent=0 // pred_check_branch
    %13 = sbr.rel (0) target = $region13
  $region12: #{vae_forward.5} parent=0 // pred_region
    _
  $region13: #{vae_forward.5} parent=0 // pred_fallthru
    _
  %v14 = vld [vmem:[%s0] sm:$0xf]
  %v15 = vld [vmem:[%s1] sm:$0xff]
  %v16 = vld [vmem:[%s1 + $0x8] sm:$0xff]
  %v17 = vld [vmem:[%s1 + $0x10] sm:$0xff]
  %v18 = vld [vmem:[%s1 + $0x18] sm:$0xff]
  %v19 = vld [vmem:[%s1 + $0x20] sm:$0xff]
  %v20 = vld [vmem:[%s1 + $0x28] sm:$0xff]
  %v21 = vld [vmem:[%s1 + $0x30] sm:$0xff]
  %v22 = vld [vmem:[%s1 + $0x38] sm:$0xff]
  %v23 = vld [vmem:[%s2] sm:$0xf]
  %25 = vset.pattern.permute.xlu0 0
  %26 = vperm.xlu0 %25, %v23
  %v27 = vpop.permute.xlu0 %26
  %vm29 = vcmask 130048
  %v31 = vsel %vm29, %v14, 0
  %33 = vmatpush.msra.mxu0 0.0
  %34 = vmatpush.msra.mxu0 0.0
  %35 = vmatpush.msra.mxu0 0.0
  %36 = vmatpush.msra.mxu0 0.0
  %37 = vmatpush.msra.mxu0 0.0
  %38 = vmatpush.msra.mxu0 0.0
  %39 = vmatpush.msra.mxu0 0.0
  %40 = vmatpush.msra.mxu0 0.0
  %41 = vmatpush.msra.mxu0 0.0
  %42 = vmatpush.msra.mxu0 0.0
  %43 = vmatpush.msra.mxu0 0.0
  %44 = vmatpush.msra.mxu0 0.0
  %45 = vmatpush.msra.mxu0 0.0
  %46 = vmatpush.msra.mxu0 0.0
  %47 = vmatpush.msra.mxu0 %v19
  %48 = vmatpush.msra.mxu0 %v15
  %49 = vmatmul.f32.gmra.mxu0 %v31
  %v50 = vpop.f32.mrf.mxu0
  %v51 = vadd.f32 %v27, %v50
  %52 = vdwg.mxu0
  %53 = vmatpush.msra.mxu0 0.0
  %54 = vmatpush.msra.mxu0 0.0
  %55 = vmatpush.msra.mxu0 0.0
  %56 = vmatpush.msra.mxu0 0.0
  %57 = vmatpush.msra.mxu0 0.0
  %58 = vmatpush.msra.mxu0 0.0
  %59 = vmatpush.msra.mxu0 0.0
  %60 = vmatpush.msra.mxu0 0.0
  %61 = vmatpush.msra.mxu0 0.0
  %62 = vmatpush.msra.mxu0 0.0
  %63 = vmatpush.msra.mxu0 0.0
  %64 = vmatpush.msra.mxu0 0.0
  %65 = vmatpush.msra.mxu0 0.0
  %66 = vmatpush.msra.mxu0 0.0
  %67 = vmatpush.msra.mxu0 %v20
  %68 = vmatpush.msra.mxu0 %v16
  %69 = vmatmul.f32.gmra.mxu0 %v31
  %v70 = vpop.f32.mrf.mxu0
  %v71 = vadd.f32 %v27, %v70
  %72 = vdwg.mxu0
  %73 = vmatpush.msra.mxu0 0.0
  %74 = vmatpush.msra.mxu0 0.0
  %75 = vmatpush.msra.mxu0 0.0
  %76 = vmatpush.msra.mxu0 0.0
  %77 = vmatpush.msra.mxu0 0.0
  %78 = vmatpush.msra.mxu0 0.0
  %79 = vmatpush.msra.mxu0 0.0
  %80 = vmatpush.msra.mxu0 0.0
  %81 = vmatpush.msra.mxu0 0.0
  %82 = vmatpush.msra.mxu0 0.0
  %83 = vmatpush.msra.mxu0 0.0
  %84 = vmatpush.msra.mxu0 0.0
  %85 = vmatpush.msra.mxu0 0.0
  %86 = vmatpush.msra.mxu0 0.0
  %87 = vmatpush.msra.mxu0 %v21
  %88 = vmatpush.msra.mxu0 %v17
  %89 = vmatmul.f32.gmra.mxu0 %v31
  %v90 = vpop.f32.mrf.mxu0
  %v91 = vadd.f32 %v27, %v90
  %92 = vdwg.mxu0
  %93 = vmatpush.msra.mxu0 0.0
  %94 = vmatpush.msra.mxu0 0.0
  %95 = vmatpush.msra.mxu0 0.0
  %96 = vmatpush.msra.mxu0 0.0
  %97 = vmatpush.msra.mxu0 0.0
  %98 = vmatpush.msra.mxu0 0.0
  %99 = vmatpush.msra.mxu0 0.0
  %100 = vmatpush.msra.mxu0 0.0
  %101 = vmatpush.msra.mxu0 0.0
  %102 = vmatpush.msra.mxu0 0.0
  %103 = vmatpush.msra.mxu0 0.0
  %104 = vmatpush.msra.mxu0 0.0
  %105 = vmatpush.msra.mxu0 0.0
  %106 = vmatpush.msra.mxu0 0.0
  %107 = vmatpush.msra.mxu0 %v22
  %108 = vmatpush.msra.mxu0 %v18
  %109 = vmatmul.f32.gmra.mxu0 %v31
  %v110 = vpop.f32.mrf.mxu0
  %v111 = vadd.f32 %v27, %v110
  %112 = vdwg.mxu0
  %v113 = vmax.f32 %v51, 0.0
  %v114 = vmax.f32 %v71, 0.0
  %v115 = vmax.f32 %v91, 0.0
  %v116 = vmax.f32 %v111, 0.0
  %v121 = vrot.slane %v114, 4
  %v122 = vrot.slane %v116, 4
  %vm123 = vcmask 1043456
  %v124 = vsel %vm123, %v113, %v121
  %v125 = vsel %vm123, %v115, %v122
  %128 = vst [vmem:[%s3] sm:$0xff] %v124
  %vm129 = vcmask 64516
  %vm130 = vmor %vm129, %vm123
  %131 = vst.msk [vmem:[%s3 + $0x8] sm:$0xff] %vm130, %v125
  // Predicated region
  $region14: #{vae_forward.5} parent=0 // pred_check
    _
  $region15: #{vae_forward.5} parent=0 // pred_check_branch
    %133 = sbr.rel (0) target = $region17
  $region16: #{vae_forward.5} parent=0 // pred_region
    _
  $region17: #{vae_forward.5} parent=0 // pred_fallthru
    _
  // Predicated region
  $region18: #{vae_forward.5} parent=0 // pred_check
    _
  $region19: #{vae_forward.5} parent=0 // pred_check_branch
    %135 = sbr.rel (0) target = $region21
  $region20: #{vae_forward.5} parent=0 // pred_region
    _
  $region21: #{vae_forward.5} parent=0 // pred_fallthru
    _

// kernel: vae_forward.6
$region0: #{vae_forward.6}
  #allocation0 [shape = 'u32[]', space=smem, size = 0x4, offset = 0x4, fixed_abs, tag = 'smem constant byte address 0x4 - core index']
  #allocation1 [shape = 'u32[72,128]{1,0:T(1,128)}', space=vmem, size = 0x9000, scoped, tag = 'internal scratch']
  %s0 = inlined_call_operand.vmem [shape: f32[4,64], index: 0, kind: input, shape index: {}]
  %s1 = inlined_call_operand.vmem [shape: f32[64,98], index: 1, kind: input, shape index: {}]
  %s2 = inlined_call_operand.vmem [shape: f32[4,1], index: 2, kind: input, shape index: {}]
  %s3 = inlined_call_operand.vmem [shape: f32[4,98], index: 3, kind: output, shape index: {}]
  %s4 = sld [smem:[#allocation0]]
  $region22: #{vae_forward.6} parent=0
    _
  %s6 = ssub.s32 1, %s4
  %s7 = scalar_select 0, %s6, %s4
  // Predicated region
  $region2: #{vae_forward.6} parent=0 // pred_check
    _
  $region3: #{vae_forward.6} parent=0 // pred_check_branch
    %9 = sbr.rel (0) target = $region5
  $region4: #{vae_forward.6} parent=0 // pred_region
    _
  $region5: #{vae_forward.6} parent=0 // pred_fallthru
    _
  // Predicated region
  $region6: #{vae_forward.6} parent=0 // pred_check
    _
  $region7: #{vae_forward.6} parent=0 // pred_check_branch
    %11 = sbr.rel (0) target = $region9
  $region8: #{vae_forward.6} parent=0 // pred_region
    _
  $region9: #{vae_forward.6} parent=0 // pred_fallthru
    _
  // Predicated region
  $region10: #{vae_forward.6} parent=0 // pred_check
    _
  $region11: #{vae_forward.6} parent=0 // pred_check_branch
    %13 = sbr.rel (0) target = $region13
  $region12: #{vae_forward.6} parent=0 // pred_region
    _
  $region13: #{vae_forward.6} parent=0 // pred_fallthru
    _
  %v14 = vld [vmem:[%s0] sm:$0xf]
  %v15 = vld [vmem:[%s1] sm:$0xff]
  %v16 = vld [vmem:[%s1 + $0x8] sm:$0xff]
  %v17 = vld [vmem:[%s1 + $0x10] sm:$0xff]
  %v18 = vld [vmem:[%s1 + $0x18] sm:$0xff]
  %v19 = vld [vmem:[%s1 + $0x20] sm:$0xff]
  %v20 = vld [vmem:[%s1 + $0x28] sm:$0xff]
  %v21 = vld [vmem:[%s1 + $0x30] sm:$0xff]
  %v22 = vld [vmem:[%s1 + $0x38] sm:$0xff]
  %v23 = vld [vmem:[%s2] sm:$0xf]
  %25 = vset.pattern.permute.xlu0 0
  %26 = vperm.xlu0 %25, %v23
  %v27 = vpop.permute.xlu0 %26
  %vm29 = vcmask 523264
  %v31 = vsel %vm29, %v14, 0
  %33 = vmatpush.msra.mxu0 0.0
  %34 = vmatpush.msra.mxu0 0.0
  %35 = vmatpush.msra.mxu0 0.0
  %36 = vmatpush.msra.mxu0 0.0
  %37 = vmatpush.msra.mxu0 0.0
  %38 = vmatpush.msra.mxu0 0.0
  %39 = vmatpush.msra.mxu0 0.0
  %40 = vmatpush.msra.mxu0 0.0
  %41 = vmatpush.msra.mxu0 %v22
  %42 = vmatpush.msra.mxu0 %v21
  %43 = vmatpush.msra.mxu0 %v20
  %44 = vmatpush.msra.mxu0 %v19
  %45 = vmatpush.msra.mxu0 %v18
  %46 = vmatpush.msra.mxu0 %v17
  %47 = vmatpush.msra.mxu0 %v16
  %48 = vmatpush.msra.mxu0 %v15
  %49 = vmatmul.f32.gmra.mxu0 %v31
  %v50 = vpop.f32.mrf.mxu0
  %v51 = vadd.f32 %v27, %v50
  %52 = vdwg.mxu0
  %v53 = vmax.f32 %v51, 0.0
  %vm54 = vcmask 797696
  %55 = vst.msk [vmem:[%s3] sm:$0xf] %vm54, %v53
  // Predicated region
  $region14: #{vae_forward.6} parent=0 // pred_check
    _
  $region15: #{vae_forward.6} parent=0 // pred_check_branch
    %57 = sbr.rel (0) target = $region17
  $region16: #{vae_forward.6} parent=0 // pred_region
    _
  $region17: #{vae_forward.6} parent=0 // pred_fallthru
    _
  // Predicated region
  $region18: #{vae_forward.6} parent=0 // pred_check
    _
  $region19: #{vae_forward.6} parent=0 // pred_check_branch
    %59 = sbr.rel (0) target = $region21
  $region20: #{vae_forward.6} parent=0 // pred_region
    _
  $region21: #{vae_forward.6} parent=0 // pred_fallthru
    _

// kernel: vae_forward.7
$region0: #{vae_forward.7}
  #allocation0 [shape = 'u32[]', space=smem, size = 0x4, offset = 0x4, fixed_abs, tag = 'smem constant byte address 0x4 - core index']
  #allocation1 [shape = 'u32[72,128]{1,0:T(1,128)}', space=vmem, size = 0x9000, scoped, tag = 'internal scratch']
  %s0 = inlined_call_operand.vmem [shape: f32[2,196], index: 0, kind: input, shape index: {}]
  %s1 = inlined_call_operand.vmem [shape: f32[2,8], index: 1, kind: input, shape index: {}]
  %s2 = inlined_call_operand.vmem [shape: f32[196,128], index: 2, kind: input, shape index: {}]
  %s3 = inlined_call_operand.vmem [shape: f32[1,128], index: 3, kind: input, shape index: {}]
  %s4 = inlined_call_operand.vmem [shape: f32[128,10], index: 4, kind: input, shape index: {}]
  %s5 = inlined_call_operand.vmem [shape: f32[1,10], index: 5, kind: input, shape index: {}]
  %s6 = inlined_call_operand.vmem [shape: f32[196,8], index: 6, kind: input, shape index: {}]
  %s7 = inlined_call_operand.vmem [shape: f32[1,8], index: 7, kind: input, shape index: {}]
  %s8 = inlined_call_operand.vmem [shape: f32[196,8], index: 8, kind: input, shape index: {}]
  %s9 = inlined_call_operand.vmem [shape: f32[1,8], index: 9, kind: input, shape index: {}]
  %s10 = inlined_call_operand.vmem [shape: f32[10,128], index: 10, kind: input, shape index: {}]
  %s11 = inlined_call_operand.vmem [shape: f32[1,128], index: 11, kind: input, shape index: {}]
  %s12 = inlined_call_operand.vmem [shape: f32[128,196], index: 12, kind: input, shape index: {}]
  %s13 = inlined_call_operand.vmem [shape: f32[1,196], index: 13, kind: input, shape index: {}]
  %s14 = inlined_call_operand.vmem [shape: f32[8,196], index: 14, kind: input, shape index: {}]
  %s15 = inlined_call_operand.vmem [shape: f32[1,196], index: 15, kind: input, shape index: {}]
  %s16 = inlined_call_operand.hbm [shape: f32[2,10], index: 16, kind: output, shape index: {0}]
  %s17 = inlined_call_operand.hbm [shape: f32[2,8], index: 17, kind: output, shape index: {1}]
  %s18 = inlined_call_operand.hbm [shape: f32[2,8], index: 18, kind: output, shape index: {2}]
  %s19 = inlined_call_operand.vmem [shape: f32[2,196], index: 19, kind: output, shape index: {3}]
  %20 = xla_tuple %s16, %s17, %s18, %s19
  %s21 = sld [smem:[#allocation0]]
  $region98: #{vae_forward.7} parent=0
    _
  %s23 = ssub.s32 1, %s21
  %s24 = scalar_select 0, %s23, %s21
  $region1: #{vae_forward.7} parent=0
    #allocation2 [shape = 'u8[1024]{0}', space=vmem, size = 0x400, scoped, tag = 'output window, operand 0, single buffered']
    #allocation3 [shape = 's32[1]{0}', space=sflag, size = 0x4, scoped, tag = 'scoped memory for vae_forward.7']
    #allocation4 [shape = 'u8[1024]{0}', space=vmem, size = 0x400, scoped, tag = 'output window, operand 1, single buffered']
    #allocation5 [shape = 's32[1]{0}', space=sflag, size = 0x4, scoped, tag = 'scoped memory for vae_forward.7']
    #allocation6 [shape = 'u8[1024]{0}', space=vmem, size = 0x400, scoped, tag = 'output window, operand 2, single buffered']
    %25 = vsyncpa [#allocation3], 0
    %26 = vsyncpa [#allocation5], 0
    // Predicated region
    $region2: #{vae_forward.7} parent=1 // pred_check
      _
    $region3: #{vae_forward.7} parent=1 // pred_check_branch
      %28 = sbr.rel (0) target = $region5
    $region4: #{vae_forward.7} parent=1 // pred_region
      _
    $region5: #{vae_forward.7} parent=1 // pred_fallthru
      _
    // Predicated region
    $region6: #{vae_forward.7} parent=1 // pred_check
      _
    $region7: #{vae_forward.7} parent=1 // pred_check_branch
      %30 = sbr.rel (0) target = $region9
    $region8: #{vae_forward.7} parent=1 // pred_region
      _
    $region9: #{vae_forward.7} parent=1 // pred_fallthru
      _
    // Predicated region
    $region10: #{vae_forward.7} parent=1 // pred_check
      _
    $region11: #{vae_forward.7} parent=1 // pred_check_branch
      %32 = sbr.rel (0) target = $region13
    $region12: #{vae_forward.7} parent=1 // pred_region
      _
    $region13: #{vae_forward.7} parent=1 // pred_fallthru
      _
    // Predicated region
    $region14: #{vae_forward.7} parent=1 // pred_check
      _
    $region15: #{vae_forward.7} parent=1 // pred_check_branch
      %34 = sbr.rel (0) target = $region17
    $region16: #{vae_forward.7} parent=1 // pred_region
      _
    $region17: #{vae_forward.7} parent=1 // pred_fallthru
      _
    // Predicated region
    $region18: #{vae_forward.7} parent=1 // pred_check
      _
    $region19: #{vae_forward.7} parent=1 // pred_check_branch
      %36 = sbr.rel (0) target = $region21
    $region20: #{vae_forward.7} parent=1 // pred_region
      _
    $region21: #{vae_forward.7} parent=1 // pred_fallthru
      _
    // Predicated region
    $region22: #{vae_forward.7} parent=1 // pred_check
      _
    $region23: #{vae_forward.7} parent=1 // pred_check_branch
      %38 = sbr.rel (0) target = $region25
    $region24: #{vae_forward.7} parent=1 // pred_region
      _
    $region25: #{vae_forward.7} parent=1 // pred_fallthru
      _
    // Predicated region
    $region26: #{vae_forward.7} parent=1 // pred_check
      _
    $region27: #{vae_forward.7} parent=1 // pred_check_branch
      %40 = sbr.rel (0) target = $region29
    $region28: #{vae_forward.7} parent=1 // pred_region
      _
    $region29: #{vae_forward.7} parent=1 // pred_fallthru
      _
    // Predicated region
    $region30: #{vae_forward.7} parent=1 // pred_check
      _
    $region31: #{vae_forward.7} parent=1 // pred_check_branch
      %42 = sbr.rel (0) target = $region33
    $region32: #{vae_forward.7} parent=1 // pred_region
      _
    $region33: #{vae_forward.7} parent=1 // pred_fallthru
      _
    // Predicated region
    $region34: #{vae_forward.7} parent=1 // pred_check
      _
    $region35: #{vae_forward.7} parent=1 // pred_check_branch
      %44 = sbr.rel (0) target = $region37
    $region36: #{vae_forward.7} parent=1 // pred_region
      _
    $region37: #{vae_forward.7} parent=1 // pred_fallthru
      _
    // Predicated region
    $region38: #{vae_forward.7} parent=1 // pred_check
      _
    $region39: #{vae_forward.7} parent=1 // pred_check_branch
      %46 = sbr.rel (0) target = $region41
    $region40: #{vae_forward.7} parent=1 // pred_region
      _
    $region41: #{vae_forward.7} parent=1 // pred_fallthru
      _
    // Predicated region
    $region42: #{vae_forward.7} parent=1 // pred_check
      _
    $region43: #{vae_forward.7} parent=1 // pred_check_branch
      %48 = sbr.rel (0) target = $region45
    $region44: #{vae_forward.7} parent=1 // pred_region
      _
    $region45: #{vae_forward.7} parent=1 // pred_fallthru
      _
    // Predicated region
    $region46: #{vae_forward.7} parent=1 // pred_check
      _
    $region47: #{vae_forward.7} parent=1 // pred_check_branch
      %50 = sbr.rel (0) target = $region49
    $region48: #{vae_forward.7} parent=1 // pred_region
      _
    $region49: #{vae_forward.7} parent=1 // pred_fallthru
      _
    // Predicated region
    $region50: #{vae_forward.7} parent=1 // pred_check
      _
    $region51: #{vae_forward.7} parent=1 // pred_check_branch
      %52 = sbr.rel (0) target = $region53
    $region52: #{vae_forward.7} parent=1 // pred_region
      _
    $region53: #{vae_forward.7} parent=1 // pred_fallthru
      _
    // Predicated region
    $region54: #{vae_forward.7} parent=1 // pred_check
      _
    $region55: #{vae_forward.7} parent=1 // pred_check_branch
      %54 = sbr.rel (0) target = $region57
    $region56: #{vae_forward.7} parent=1 // pred_region
      _
    $region57: #{vae_forward.7} parent=1 // pred_fallthru
      _
    // Predicated region
    $region58: #{vae_forward.7} parent=1 // pred_check
      _
    $region59: #{vae_forward.7} parent=1 // pred_check_branch
      %56 = sbr.rel (0) target = $region61
    $region60: #{vae_forward.7} parent=1 // pred_region
      _
    $region61: #{vae_forward.7} parent=1 // pred_fallthru
      _
    // Predicated region
    $region62: #{vae_forward.7} parent=1 // pred_check
      _
    $region63: #{vae_forward.7} parent=1 // pred_check_branch
      %58 = sbr.rel (0) target = $region65
    $region64: #{vae_forward.7} parent=1 // pred_region
      _
    $region65: #{vae_forward.7} parent=1 // pred_fallthru
      _
    %v59 = vld [vmem:[%s0] sm:$0xf]
    %v60 = vld [vmem:[%s2] sm:$0xff]
    %v61 = vld [vmem:[%s2 + $0x8] sm:$0xff]
    %v62 = vld [vmem:[%s2 + $0x10] sm:$0xff]
    %v63 = vld [vmem:[%s2 + $0x18] sm:$0xff]
    %v64 = vld [vmem:[%s2 + $0x20] sm:$0xff]
    %v65 = vld [vmem:[%s2 + $0x28] sm:$0xff]
    %v66 = vld [vmem:[%s2 + $0x30] sm:$0xff]
    %v67 = vld [vmem:[%s2 + $0x38] sm:$0xff]
    %v68 = vld [vmem:[%s2 + $0x40] sm:$0xff]
    %v69 = vld [vmem:[%s2 + $0x48] sm:$0xff]
    %v70 = vld [vmem:[%s2 + $0x50] sm:$0xff]
    %v71 = vld [vmem:[%s2 + $0x58] sm:$0xff]
    %v72 = vld [vmem:[%s2 + $0x60] sm:$0xff]
    %v73 = vld [vmem:[%s2 + $0x68] sm:$0xff]
    %v74 = vld [vmem:[%s2 + $0x70] sm:$0xff]
    %v75 = vld [vmem:[%s2 + $0x78] sm:$0xff]
    %v76 = vld [vmem:[%s2 + $0x80] sm:$0xff]
    %v77 = vld [vmem:[%s2 + $0x88] sm:$0xff]
    %v78 = vld [vmem:[%s2 + $0x90] sm:$0xff]
    %v79 = vld [vmem:[%s2 + $0x98] sm:$0xff]
    %v80 = vld [vmem:[%s2 + $0xa0] sm:$0xff]
    %v81 = vld [vmem:[%s2 + $0xa8] sm:$0xff]
    %v82 = vld [vmem:[%s2 + $0xb0] sm:$0xff]
    %v83 = vld [vmem:[%s2 + $0xb8] sm:$0xff]
    %v84 = vld [vmem:[%s2 + $0xc0] sm:$0xf]
    %v85 = vld [vmem:[%s3] sm:$0x1]
    %v87 = vperm.slane %v85, 0
    %90 = vst [vmem:[#allocation1] ss:$4 sm:$0xff] %v59
    %v91 = vld.sshfl [vmem:[#allocation1] sm:$0xff pattern:$0x73625140]
    %v92 = vld.sshfl [vmem:[#allocation1 + $0x8] sm:$0xff pattern:$0x73625140]
    %vm94 = vcmask 556032
    %v95 = vsel %vm94, %v92, 0
    %vm97 = vcmask 1043456
    %v99 = vsel %vm97, %v84, 0
    %101 = vmatpush.msra.mxu0 %v75
    %102 = vmatpush.msra.mxu0 %v74
    %103 = vmatpush.msra.mxu0 %v73
    %104 = vmatpush.msra.mxu0 %v72
    %105 = vmatpush.msra.mxu0 %v71
    %106 = vmatpush.msra.mxu0 %v70
    %107 = vmatpush.msra.mxu0 %v69
    %108 = vmatpush.msra.mxu0 %v68
    %109 = vmatpush.msra.mxu0 %v67
    %110 = vmatpush.msra.mxu0 %v66
    %111 = vmatpush.msra.mxu0 %v65
    %112 = vmatpush.msra.mxu0 %v64
    %113 = vmatpush.msra.mxu0 %v63
    %114 = vmatpush.msra.mxu0 %v62
    %115 = vmatpush.msra.mxu0 %v61
    %116 = vmatpush.msra.mxu0 %v60
    %117 = vmatmul.f32.gmra.mxu0 %v91
    %v118 = vpop.f32.mrf.mxu0
    %v119 = vadd.f32 %v87, %v118
    %120 = vdwg.mxu0
    %121 = vmatpush.msra.mxu0 0.0
    %122 = vmatpush.msra.mxu0 0.0
    %123 = vmatpush.msra.mxu0 0.0
    %124 = vmatpush.msra.mxu0 0.0
    %125 = vmatpush.msra.mxu0 0.0
    %126 = vmatpush.msra.mxu0 0.0
    %127 = vmatpush.msra.mxu0 0.0
    %128 = vmatpush.msra.mxu0 %v99
    %129 = vmatpush.msra.mxu0 %v83
    %130 = vmatpush.msra.mxu0 %v82
    %131 = vmatpush.msra.mxu0 %v81
    %132 = vmatpush.msra.mxu0 %v80
    %133 = vmatpush.msra.mxu0 %v79
    %134 = vmatpush.msra.mxu0 %v78
    %135 = vmatpush.msra.mxu0 %v77
    %136 = vmatpush.msra.mxu0 %v76
    %137 = vmatmul.f32.gmra.mxu0 %v95
    %v138 = vpop.f32.mrf.mxu0
    %v139 = vadd.f32 %v119, %v138
    %140 = vdwg.mxu0
    %v141 = vmax.f32 %v139, 0.0
    %v142 = vld [vmem:[%s4] sm:$0xff]
    %v143 = vld [vmem:[%s4 + $0x8] sm:$0xff]
    %v144 = vld [vmem:[%s4 + $0x10] sm:$0xff]
    %v145 = vld [vmem:[%s4 + $0x18] sm:$0xff]
    %v146 = vld [vmem:[%s4 + $0x20] sm:$0xff]
    %v147 = vld [vmem:[%s4 + $0x28] sm:$0xff]
    %v148 = vld [vmem:[%s4 + $0x30] sm:$0xff]
    %v149 = vld [vmem:[%s4 + $0x38] sm:$0xff]
    %v150 = vld [vmem:[%s4 + $0x40] sm:$0xff]
    %v151 = vld [vmem:[%s4 + $0x48] sm:$0xff]
    %v152 = vld [vmem:[%s4 + $0x50] sm:$0xff]
    %v153 = vld [vmem:[%s4 + $0x58] sm:$0xff]
    %v154 = vld [vmem:[%s4 + $0x60] sm:$0xff]
    %v155 = vld [vmem:[%s4 + $0x68] sm:$0xff]
    %v156 = vld [vmem:[%s4 + $0x70] sm:$0xff]
    %v157 = vld [vmem:[%s4 + $0x78] sm:$0xff]
    %v158 = vld [vmem:[%s5] sm:$0x1]
    %v160 = vperm.slane %v158, 0
    %162 = vmatpush.msra.mxu0 %v157
    %163 = vmatpush.msra.mxu0 %v156
    %164 = vmatpush.msra.mxu0 %v155
    %165 = vmatpush.msra.mxu0 %v154
    %166 = vmatpush.msra.mxu0 %v153
    %167 = vmatpush.msra.mxu0 %v152
    %168 = vmatpush.msra.mxu0 %v151
    %169 = vmatpush.msra.mxu0 %v150
    %170 = vmatpush.msra.mxu0 %v149
    %171 = vmatpush.msra.mxu0 %v148
    %172 = vmatpush.msra.mxu0 %v147
    %173 = vmatpush.msra.mxu0 %v146
    %174 = vmatpush.msra.mxu0 %v145
    %175 = vmatpush.msra.mxu0 %v144
    %176 = vmatpush.msra.mxu0 %v143
    %177 = vmatpush.msra.mxu0 %v142
    %178 = vmatmul.f32.gmra.mxu0 %v141
    %v179 = vpop.f32.mrf.mxu0
    %v180 = vadd.f32 %v160, %v179
    %181 = vdwg.mxu0
    %v182 = vld [vmem:[%s6] sm:$0xff]
    %v183 = vld [vmem:[%s6 + $0x8] sm:$0xff]
    %v184 = vld [vmem:[%s6 + $0x10] sm:$0xff]
    %v185 = vld [vmem:[%s6 + $0x18] sm:$0xff]
    %v186 = vld [vmem:[%s6 + $0x20] sm:$0xff]
    %v187 = vld [vmem:[%s6 + $0x28] sm:$0xff]
    %v188 = vld [vmem:[%s6 + $0x30] sm:$0xff]
    %v189 = vld [vmem:[%s6 + $0x38] sm:$0xff]
    %v190 = vld [vmem:[%s6 + $0x40] sm:$0xff]
    %v191 = vld [vmem:[%s6 + $0x48] sm:$0xff]
    %v192 = vld [vmem:[%s6 + $0x50] sm:$0xff]
    %v193 = vld [vmem:[%s6 + $0x58] sm:$0xff]
    %v194 = vld [vmem:[%s6 + $0x60] sm:$0xff]
    %v195 = vld [vmem:[%s6 + $0x68] sm:$0xff]
    %v196 = vld [vmem:[%s6 + $0x70] sm:$0xff]
    %v197 = vld [vmem:[%s6 + $0x78] sm:$0xff]
    %v198 = vld [vmem:[%s6 + $0x80] sm:$0xff]
    %v199 = vld [vmem:[%s6 + $0x88] sm:$0xff]
    %v200 = vld [vmem:[%s6 + $0x90] sm:$0xff]
    %v201 = vld [vmem:[%s6 + $0x98] sm:$0xff]
    %v202 = vld [vmem:[%s6 + $0xa0] sm:$0xff]
    %v203 = vld [vmem:[%s6 + $0xa8] sm:$0xff]
    %v204 = vld [vmem:[%s6 + $0xb0] sm:$0xff]
    %v205 = vld [vmem:[%s6 + $0xb8] sm:$0xff]
    %v206 = vld [vmem:[%s6 + $0xc0] sm:$0xf]
    %v207 = vld [vmem:[%s7] sm:$0x1]
    %v209 = vperm.slane %v207, 0
    %211 = vst [vmem:[#allocation1] ss:$4 sm:$0xff] %v59
    %v212 = vld.sshfl [vmem:[#allocation1] sm:$0xff pattern:$0x73625140]
    %v213 = vld.sshfl [vmem:[#allocation1 + $0x8] sm:$0xff pattern:$0x73625140]
    %v215 = vsel %vm94, %v213, 0
    %v218 = vsel %vm97, %v206, 0
    %220 = vmatpush.msra.mxu0 %v197
    %221 = vmatpush.msra.mxu0 %v196
    %222 = vmatpush.msra.mxu0 %v195
    %223 = vmatpush.msra.mxu0 %v194
    %224 = vmatpush.msra.mxu0 %v193
    %225 = vmatpush.msra.mxu0 %v192
    %226 = vmatpush.msra.mxu0 %v191
    %227 = vmatpush.msra.mxu0 %v190
    %228 = vmatpush.msra.mxu0 %v189
    %229 = vmatpush.msra.mxu0 %v188
    %230 = vmatpush.msra.mxu0 %v187
    %231 = vmatpush.msra.mxu0 %v186
    %232 = vmatpush.msra.mxu0 %v185
    %233 = vmatpush.msra.mxu0 %v184
    %234 = vmatpush.msra.mxu0 %v183
    %235 = vmatpush.msra.mxu0 %v182
    %236 = vmatmul.f32.gmra.mxu0 %v212
    %v237 = vpop.f32.mrf.mxu0
    %v238 = vadd.f32 %v209, %v237
    %239 = vdwg.mxu0
    %240 = vmatpush.msra.mxu0 0.0
    %241 = vmatpush.msra.mxu0 0.0
    %242 = vmatpush.msra.mxu0 0.0
    %243 = vmatpush.msra.mxu0 0.0
    %244 = vmatpush.msra.mxu0 0.0
    %245 = vmatpush.msra.mxu0 0.0
    %246 = vmatpush.msra.mxu0 0.0
    %247 = vmatpush.msra.mxu0 %v218
    %248 = vmatpush.msra.mxu0 %v205
    %249 = vmatpush.msra.mxu0 %v204
    %250 = vmatpush.msra.mxu0 %v203
    %251 = vmatpush.msra.mxu0 %v202
    %252 = vmatpush.msra.mxu0 %v201
    %253 = vmatpush.msra.mxu0 %v200
    %254 = vmatpush.msra.mxu0 %v199
    %255 = vmatpush.msra.mxu0 %v198
    %256 = vmatmul.f32.gmra.mxu0 %v215
    %v257 = vpop.f32.mrf.mxu0
    %v258 = vadd.f32 %v238, %v257
    %259 = vdwg.mxu0
    %v260 = vld [vmem:[%s8] sm:$0xff]
    %v261 = vld [vmem:[%s8 + $0x8] sm:$0xff]
    %v262 = vld [vmem:[%s8 + $0x10] sm:$0xff]
    %v263 = vld [vmem:[%s8 + $0x18] sm:$0xff]
    %v264 = vld [vmem:[%s8 + $0x20] sm:$0xff]
    %v265 = vld [vmem:[%s8 + $0x28] sm:$0xff]
    %v266 = vld [vmem:[%s8 + $0x30] sm:$0xff]
    %v267 = vld [vmem:[%s8 + $0x38] sm:$0xff]
    %v268 = vld [vmem:[%s8 + $0x40] sm:$0xff]
    %v269 = vld [vmem:[%s8 + $0x48] sm:$0xff]
    %v270 = vld [vmem:[%s8 + $0x50] sm:$0xff]
    %v271 = vld [vmem:[%s8 + $0x58] sm:$0xff]
    %v272 = vld [vmem:[%s8 + $0x60] sm:$0xff]
    %v273 = vld [vmem:[%s8 + $0x68] sm:$0xff]
    %v274 = vld [vmem:[%s8 + $0x70] sm:$0xff]
    %v275 = vld [vmem:[%s8 + $0x78] sm:$0xff]
    %v276 = vld [vmem:[%s8 + $0x80] sm:$0xff]
    %v277 = vld [vmem:[%s8 + $0x88] sm:$0xff]
    %v278 = vld [vmem:[%s8 + $0x90] sm:$0xff]
    %v279 = vld [vmem:[%s8 + $0x98] sm:$0xff]
    %v280 = vld [vmem:[%s8 + $0xa0] sm:$0xff]
    %v281 = vld [vmem:[%s8 + $0xa8] sm:$0xff]
    %v282 = vld [vmem:[%s8 + $0xb0] sm:$0xff]
    %v283 = vld [vmem:[%s8 + $0xb8] sm:$0xff]
    %v284 = vld [vmem:[%s8 + $0xc0] sm:$0xf]
    %v285 = vld [vmem:[%s9] sm:$0x1]
    %v287 = vperm.slane %v285, 0
    %289 = vst [vmem:[#allocation1] ss:$4 sm:$0xff] %v59
    %v290 = vld.sshfl [vmem:[#allocation1] sm:$0xff pattern:$0x73625140]
    %v291 = vld.sshfl [vmem:[#allocation1 + $0x8] sm:$0xff pattern:$0x73625140]
    %v293 = vsel %vm94, %v291, 0
    %v296 = vsel %vm97, %v284, 0
    %298 = vmatpush.msra.mxu0 %v275
    %299 = vmatpush.msra.mxu0 %v274
    %300 = vmatpush.msra.mxu0 %v273
    %301 = vmatpush.msra.mxu0 %v272
    %302 = vmatpush.msra.mxu0 %v271
    %303 = vmatpush.msra.mxu0 %v270
    %304 = vmatpush.msra.mxu0 %v269
    %305 = vmatpush.msra.mxu0 %v268
    %306 = vmatpush.msra.mxu0 %v267
    %307 = vmatpush.msra.mxu0 %v266
    %308 = vmatpush.msra.mxu0 %v265
    %309 = vmatpush.msra.mxu0 %v264
    %310 = vmatpush.msra.mxu0 %v263
    %311 = vmatpush.msra.mxu0 %v262
    %312 = vmatpush.msra.mxu0 %v261
    %313 = vmatpush.msra.mxu0 %v260
    %314 = vmatmul.f32.gmra.mxu0 %v290
    %v315 = vpop.f32.mrf.mxu0
    %v316 = vadd.f32 %v287, %v315
    %317 = vdwg.mxu0
    %318 = vmatpush.msra.mxu0 0.0
    %319 = vmatpush.msra.mxu0 0.0
    %320 = vmatpush.msra.mxu0 0.0
    %321 = vmatpush.msra.mxu0 0.0
    %322 = vmatpush.msra.mxu0 0.0
    %323 = vmatpush.msra.mxu0 0.0
    %324 = vmatpush.msra.mxu0 0.0
    %325 = vmatpush.msra.mxu0 %v296
    %326 = vmatpush.msra.mxu0 %v283
    %327 = vmatpush.msra.mxu0 %v282
    %328 = vmatpush.msra.mxu0 %v281
    %329 = vmatpush.msra.mxu0 %v280
    %330 = vmatpush.msra.mxu0 %v279
    %331 = vmatpush.msra.mxu0 %v278
    %332 = vmatpush.msra.mxu0 %v277
    %333 = vmatpush.msra.mxu0 %v276
    %334 = vmatmul.f32.gmra.mxu0 %v293
    %v335 = vpop.f32.mrf.mxu0
    %v336 = vadd.f32 %v316, %v335
    %337 = vdwg.mxu0
    %v338 = vmul.f32 %v336, 0.5
    %v339 = vmul.f32 %v338, 1.442695
    %v340 = vpow.pop %v339
    %v341 = vld [vmem:[%s1] sm:$0x3]
    %v342 = vmul.f32 %v340, %v341
    %v343 = vadd.f32 %v258, %v342
    %vm344 = vcmask 74752
    %v345 = vsel %vm344, %v180, -inf
    %346 = vmax.xlane.f32.xlu0 %v345
    %v347 = vpop.xlane.xlu0 %346
    %v348 = vsub.f32 %v180, %v347
    %v349 = vmul.f32 %v348, 1.442695
    %v350 = vpow.pop %v349
    %v351 = vsel %vm344, %v350, 0.0
    %352 = vadd.xlane.f32.xlu0 %v351
    %v353 = vpop.xlane.xlu0 %352
    %v354 = vrcp.pop %v353
    %v355 = vmul.f32 %v353, %v354
    %v356 = vsub.f32 1.0, %v355
    %v357 = vmul.f32 %v354, %v356
    %v358 = vadd.f32 %v354, %v357
    %vm359 = vweird.f32 %v353
    %vm360 = vweird.f32 %v354
    %vm361 = vmor %vm359, %vm360
    %v362 = vsel %vm361, %v354, %v358
    %v363 = vand.u32 2147483647, %v353
    %vm364 = vcmp.eq.f32.partialorder %v363, 8.507059e+37
    %v365 = vand.u32 %v353, 2147483648
    %v366 = vor.u32 1.1754944e-38, %v365
    %v367 = vsel %vm364, %v366, %v362
    %v368 = vmul.f32 %v350, %v367
    %v369 = vld [vmem:[%s10] sm:$0xff]
    %v370 = vld [vmem:[%s10 + $0x8] sm:$0x3]
    %v371 = vld [vmem:[%s11] sm:$0x1]
    %v373 = vperm.slane %v371, 0
    %vm375 = vcmask 80896
    %v377 = vsel %vm375, %v368, 0
    %vm379 = vcmask 1041408
    %v381 = vsel %vm379, %v370, 0
    %383 = vmatpush.msra.mxu0 0.0
    %384 = vmatpush.msra.mxu0 0.0
    %385 = vmatpush.msra.mxu0 0.0
    %386 = vmatpush.msra.mxu0 0.0
    %387 = vmatpush.msra.mxu0 0.0
    %388 = vmatpush.msra.mxu0 0.0
    %389 = vmatpush.msra.mxu0 0.0
    %390 = vmatpush.msra.mxu0 0.0
    %391 = vmatpush.msra.mxu0 0.0
    %392 = vmatpush.msra.mxu0 0.0
    %393 = vmatpush.msra.mxu0 0.0
    %394 = vmatpush.msra.mxu0 0.0
    %395 = vmatpush.msra.mxu0 0.0
    %396 = vmatpush.msra.mxu0 0.0
    %397 = vmatpush.msra.mxu0 %v381
    %398 = vmatpush.msra.mxu0 %v369
    %399 = vmatmul.f32.gmra.mxu0 %v377
    %v400 = vpop.f32.mrf.mxu0
    %v401 = vadd.f32 %v373, %v400
    %402 = vdwg.mxu0
    %v403 = vmax.f32 %v401, 0.0
    %v404 = vld [vmem:[%s12] sm:$0xff]
    %v405 = vld [vmem:[%s12 + $0x8] sm:$0xff]
    %v406 = vld [vmem:[%s12 + $0x10] sm:$0xff]
    %v407 = vld [vmem:[%s12 + $0x18] sm:$0xff]
    %v408 = vld [vmem:[%s12 + $0x20] sm:$0xff]
    %v409 = vld [vmem:[%s12 + $0x28] sm:$0xff]
    %v410 = vld [vmem:[%s12 + $0x30] sm:$0xff]
    %v411 = vld [vmem:[%s12 + $0x38] sm:$0xff]
    %v412 = vld [vmem:[%s12 + $0x40] sm:$0xff]
    %v413 = vld [vmem:[%s12 + $0x48] sm:$0xff]
    %v414 = vld [vmem:[%s12 + $0x50] sm:$0xff]
    %v415 = vld [vmem:[%s12 + $0x58] sm:$0xff]
    %v416 = vld [vmem:[%s12 + $0x60] sm:$0xff]
    %v417 = vld [vmem:[%s12 + $0x68] sm:$0xff]
    %v418 = vld [vmem:[%s12 + $0x70] sm:$0xff]
    %v419 = vld [vmem:[%s12 + $0x78] sm:$0xff]
    %v420 = vld [vmem:[%s12 + $0x80] sm:$0xff]
    %v421 = vld [vmem:[%s12 + $0x88] sm:$0xff]
    %v422 = vld [vmem:[%s12 + $0x90] sm:$0xff]
    %v423 = vld [vmem:[%s12 + $0x98] sm:$0xff]
    %v424 = vld [vmem:[%s12 + $0xa0] sm:$0xff]
    %v425 = vld [vmem:[%s12 + $0xa8] sm:$0xff]
    %v426 = vld [vmem:[%s12 + $0xb0] sm:$0xff]
    %v427 = vld [vmem:[%s12 + $0xb8] sm:$0xff]
    %v428 = vld [vmem:[%s12 + $0xc0] sm:$0xff]
    %v429 = vld [vmem:[%s12 + $0xc8] sm:$0xff]
    %v430 = vld [vmem:[%s12 + $0xd0] sm:$0xff]
    %v431 = vld [vmem:[%s12 + $0xd8] sm:$0xff]
    %v432 = vld [vmem:[%s12 + $0xe0] sm:$0xff]
    %v433 = vld [vmem:[%s12 + $0xe8] sm:$0xff]
    %v434 = vld [vmem:[%s12 + $0xf0] sm:$0xff]
    %v435 = vld [vmem:[%s12 + $0xf8] sm:$0xff]
    %v436 = vld [vmem:[%s13] sm:$0x3]
    %v438 = vperm.slane %v436, 0
    %v439 = vperm.slane %v436, 1
    %442 = vmatpush.msra.mxu0 %v434
    %443 = vmatpush.msra.mxu0 %v432
    %444 = vmatpush.msra.mxu0 %v430
    %445 = vmatpush.msra.mxu0 %v428
    %446 = vmatpush.msra.mxu0 %v426
    %447 = vmatpush.msra.mxu0 %v424
    %448 = vmatpush.msra.mxu0 %v422
    %449 = vmatpush.msra.mxu0 %v420
    %450 = vmatpush.msra.mxu0 %v418
    %451 = vmatpush.msra.mxu0 %v416
    %452 = vmatpush.msra.mxu0 %v414
    %453 = vmatpush.msra.mxu0 %v412
    %454 = vmatpush.msra.mxu0 %v410
    %455 = vmatpush.msra.mxu0 %v408
    %456 = vmatpush.msra.mxu0 %v406
    %457 = vmatpush.msra.mxu0 %v404
    %458 = vmatmul.f32.gmra.mxu0 %v403
    %v459 = vpop.f32.mrf.mxu0
    %v460 = vadd.f32 %v438, %v459
    %461 = vdwg.mxu0
    %462 = vmatpush.msra.mxu0 %v435
    %463 = vmatpush.msra.mxu0 %v433
    %464 = vmatpush.msra.mxu0 %v431
    %465 = vmatpush.msra.mxu0 %v429
    %466 = vmatpush.msra.mxu0 %v427
    %467 = vmatpush.msra.mxu0 %v425
    %468 = vmatpush.msra.mxu0 %v423
    %469 = vmatpush.msra.mxu0 %v421
    %470 = vmatpush.msra.mxu0 %v419
    %471 = vmatpush.msra.mxu0 %v417
    %472 = vmatpush.msra.mxu0 %v415
    %473 = vmatpush.msra.mxu0 %v413
    %474 = vmatpush.msra.mxu0 %v411
    %475 = vmatpush.msra.mxu0 %v409
    %476 = vmatpush.msra.mxu0 %v407
    %477 = vmatpush.msra.mxu0 %v405
    %478 = vmatmul.f32.gmra.mxu0 %v403
    %v479 = vpop.f32.mrf.mxu0
    %v480 = vadd.f32 %v439, %v479
    %481 = vdwg.mxu0
    %v482 = vmax.f32 %v460, 0.0
    %v483 = vmax.f32 %v480, 0.0
    %v484 = vld [vmem:[%s14] sm:$0xff]
    %v485 = vld [vmem:[%s14 + $0x8] sm:$0xff]
    %v486 = vld [vmem:[%s15] sm:$0x3]
    %v488 = vperm.slane %v486, 0
    %v489 = vperm.slane %v486, 1
    %vm492 = vcmask 64512
    %v494 = vsel %vm492, %v343, 0
    %496 = vmatpush.msra.mxu0 0.0
    %497 = vmatpush.msra.mxu0 0.0
    %498 = vmatpush.msra.mxu0 0.0
    %499 = vmatpush.msra.mxu0 0.0
    %500 = vmatpush.msra.mxu0 0.0
    %501 = vmatpush.msra.mxu0 0.0
    %502 = vmatpush.msra.mxu0 0.0
    %503 = vmatpush.msra.mxu0 0.0
    %504 = vmatpush.msra.mxu0 0.0
    %505 = vmatpush.msra.mxu0 0.0
    %506 = vmatpush.msra.mxu0 0.0
    %507 = vmatpush.msra.mxu0 0.0
    %508 = vmatpush.msra.mxu0 0.0
    %509 = vmatpush.msra.mxu0 0.0
    %510 = vmatpush.msra.mxu0 0.0
    %511 = vmatpush.msra.mxu0 %v484
    %512 = vmatmul.f32.gmra.mxu0 %v494
    %v513 = vpop.f32.mrf.mxu0
    %v514 = vadd.f32 %v488, %v513
    %515 = vdwg.mxu0
    %516 = vmatpush.msra.mxu0 0.0
    %517 = vmatpush.msra.mxu0 0.0
    %518 = vmatpush.msra.mxu0 0.0
    %519 = vmatpush.msra.mxu0 0.0
    %520 = vmatpush.msra.mxu0 0.0
    %521 = vmatpush.msra.mxu0 0.0
    %522 = vmatpush.msra.mxu0 0.0
    %523 = vmatpush.msra.mxu0 0.0
    %524 = vmatpush.msra.mxu0 0.0
    %525 = vmatpush.msra.mxu0 0.0
    %526 = vmatpush.msra.mxu0 0.0
    %527 = vmatpush.msra.mxu0 0.0
    %528 = vmatpush.msra.mxu0 0.0
    %529 = vmatpush.msra.mxu0 0.0
    %530 = vmatpush.msra.mxu0 0.0
    %531 = vmatpush.msra.mxu0 %v485
    %532 = vmatmul.f32.gmra.mxu0 %v494
    %v533 = vpop.f32.mrf.mxu0
    %v534 = vadd.f32 %v489, %v533
    %535 = vdwg.mxu0
    %v536 = vadd.f32 %v514, %v482
    %v537 = vadd.f32 %v534, %v483
    %538 = vst.msk [vmem:[#allocation2] sm:$0x3] %vm344, %v180
    %vm539 = vcmask 58368
    %540 = vst.msk [vmem:[#allocation4] sm:$0x3] %vm539, %v258
    %541 = vst.msk [vmem:[#allocation6] sm:$0x3] %vm539, %v336
    %v544 = vrot.slane %v537, 6
    %v545 = vsel %vm379, %v536, %v544
    %vm547 = vcmask 551938
    %vm548 = vmor %vm547, %vm379
    %549 = vst.msk [vmem:[%s19] sm:$0xf] %vm548, %v545
    // Predicated region
    $region66: #{vae_forward.7} parent=1 // pred_check
      _
    $region67: #{vae_forward.7} parent=1 // pred_check_branch
      %551 = sbr.rel (0) target = $region69
    $region68: #{vae_forward.7} parent=1 // pred_region
      %553 = vsyncadd [#allocation3], 0
      %s555 = sshll.u32 [#allocation2], 4
      %s556 = int_to_ptr.vmem [resolvable:$true] %s555
      %s557 = sshll.u32 %s16, 4
      %s558 = int_to_ptr.hbm [resolvable:$true] %s557
      %560 = dma.vmem_to_hbm [thread:$0]  %s556, 32, %s558, [#allocation3]
    $region69: #{vae_forward.7} parent=1 // pred_fallthru
      _
    // Predicated region
    $region70: #{vae_forward.7} parent=1 // pred_check
      _
    $region71: #{vae_forward.7} parent=1 // pred_check_branch
      %562 = sbr.rel (0) target = $region73
    $region72: #{vae_forward.7} parent=1 // pred_region
      %564 = vsyncadd [#allocation5], 0
      %s566 = sshll.u32 [#allocation4], 4
      %s567 = int_to_ptr.vmem [resolvable:$true] %s566
      %s568 = sshll.u32 %s17, 4
      %s569 = int_to_ptr.hbm [resolvable:$true] %s568
      %571 = dma.vmem_to_hbm [thread:$0]  %s567, 32, %s569, [#allocation5]
    $region73: #{vae_forward.7} parent=1 // pred_fallthru
      _
    // Predicated region
    $region74: #{vae_forward.7} parent=1 // pred_check
      _
    $region75: #{vae_forward.7} parent=1 // pred_check_branch
      %573 = sbr.rel (0) target = $region77
    $region76: #{vae_forward.7} parent=1 // pred_region
      %575 = vsyncadd [#allocation5], 0
      %s577 = sshll.u32 [#allocation6], 4
      %s578 = int_to_ptr.vmem [resolvable:$true] %s577
      %s579 = sshll.u32 %s18, 4
      %s580 = int_to_ptr.hbm [resolvable:$true] %s579
      %582 = dma.vmem_to_hbm [thread:$0]  %s578, 32, %s580, [#allocation5]
    $region77: #{vae_forward.7} parent=1 // pred_fallthru
      _
    // Predicated region
    $region78: #{vae_forward.7} parent=1 // pred_check
      _
    $region79: #{vae_forward.7} parent=1 // pred_check_branch
      %584 = sbr.rel (0) target = $region81
    $region80: #{vae_forward.7} parent=1 // pred_region
      _
    $region81: #{vae_forward.7} parent=1 // pred_fallthru
      _
    // Predicated region
    $region82: #{vae_forward.7} parent=1 // pred_check
      _
    $region83: #{vae_forward.7} parent=1 // pred_check_branch
      %586 = sbr.rel (0) target = $region85
    $region84: #{vae_forward.7} parent=1 // pred_region
      %588 = dma.done [#allocation3], 32
    $region85: #{vae_forward.7} parent=1 // pred_fallthru
      _
    // Predicated region
    $region86: #{vae_forward.7} parent=1 // pred_check
      _
    $region87: #{vae_forward.7} parent=1 // pred_check_branch
      %590 = sbr.rel (0) target = $region89
    $region88: #{vae_forward.7} parent=1 // pred_region
      %592 = dma.done [#allocation5], 32
    $region89: #{vae_forward.7} parent=1 // pred_fallthru
      _
    // Predicated region
    $region90: #{vae_forward.7} parent=1 // pred_check
      _
    $region91: #{vae_forward.7} parent=1 // pred_check_branch
      %594 = sbr.rel (0) target = $region93
    $region92: #{vae_forward.7} parent=1 // pred_region
      %596 = dma.done [#allocation5], 32
    $region93: #{vae_forward.7} parent=1 // pred_fallthru
      _
    // Predicated region
    $region94: #{vae_forward.7} parent=1 // pred_check
      _
    $region95: #{vae_forward.7} parent=1 // pred_check_branch
      %598 = sbr.rel (0) target = $region97
    $region96: #{vae_forward.7} parent=1 // pred_region
      _
    $region97: #{vae_forward.7} parent=1 // pred_fallthru
      _
    %599 = vsyncpa [#allocation3], 1
    %600 = vsyncpa [#allocation5], 1

// kernel: tile.12
$region0: #{tile.12}
  #allocation0 [shape = 's32[1]{0}', space=sflag, size = 0x4, scoped, tag = 'scoped memory for tile.12']
  %s0 = inlined_call_operand.vmem [shape: f32[4], index: 0, kind: input, shape index: {}]
  %s1 = inlined_call_operand.vmem [shape: f32[4,4], index: 1, kind: output, shape index: {}]
  // Predicated region
  $region2: #{tile.12} parent=0 // pred_check
    _
  $region3: #{tile.12} parent=0 // pred_check_branch
    %3 = sbr.rel (0) target = $region5
  $region4: #{tile.12} parent=0 // pred_region
    _
  $region5: #{tile.12} parent=0 // pred_fallthru
    _
  %v4 = vld [vmem:[%s0] ss:$0 sm:$0xff]
  %5 = vst [vmem:[%s1] sm:$0xf] %v4

// kernel: tile.0
$region0: #{tile.0}
  %s0 = inlined_call_operand.vmem [shape: f32[4,4], index: 0, kind: input, shape index: {}]
  %s1 = inlined_call_operand.vmem [shape: f32[16,1], index: 1, kind: output, shape index: {}]
  $region1: #{tile.0} parent=0
    #allocation0 [shape = 'u8[4096]{0}', space=vmem, size = 0x1000, scoped, tag = 'scoped mem for input reshape']
    %s3 = ssub.s32 16, 1
    %v4 = vld [vmem:[%s0] sm:%s3]
    %5 = vst [vmem:[#allocation0] sm:%s3] %v4
    %v6 = vld [vmem:[#allocation0] sm:$0xf]
    %vm7 = vcmask 7168
    %8 = vst.msk [vmem:[%s1] ss:$4 sm:$0xf] %vm7, %v6
    %v9 = vld [vmem:[#allocation0] sm:$0xf]
    %10 = vrot.lane.b32.xlu0 %v9, 127
    %v11 = vpop.permute.xlu0 %10
    %vm12 = vcmask 7168
    %s13 = scalar_lea.vmem %s1, 1
    %14 = vst.msk [vmem:[%s13] ss:$4 sm:$0xf] %vm12, %v11
    %v15 = vld [vmem:[#allocation0] sm:$0xf]
    %16 = vrot.lane.b32.xlu0 %v15, 126
    %v17 = vpop.permute.xlu0 %16
    %vm18 = vcmask 7168
    %s19 = scalar_lea.vmem %s1, 2
    %20 = vst.msk [vmem:[%s19] ss:$4 sm:$0xf] %vm18, %v17
    %v21 = vld [vmem:[#allocation0] sm:$0xf]
    %22 = vrot.lane.b32.xlu0 %v21, 125
    %v23 = vpop.permute.xlu0 %22
    %vm24 = vcmask 7168
    %s25 = scalar_lea.vmem %s1, 3
    %26 = vst.msk [vmem:[%s25] ss:$4 sm:$0xf] %vm24, %v23

// kernel: vae_forward.8
$region0: #{vae_forward.8}
  #allocation0 [shape = 'u32[]', space=smem, size = 0x4, offset = 0x4, fixed_abs, tag = 'smem constant byte address 0x4 - core index']
  #allocation1 [shape = 'u32[72,128]{1,0:T(1,128)}', space=vmem, size = 0x9000, scoped, tag = 'internal scratch']
  %s0 = inlined_call_operand.vmem [shape: f32[16,36], index: 0, kind: input, shape index: {}]
  %s1 = inlined_call_operand.vmem [shape: f32[36,98], index: 1, kind: input, shape index: {}]
  %s2 = inlined_call_operand.vmem [shape: f32[16,1], index: 2, kind: input, shape index: {}]
  %s3 = inlined_call_operand.vmem [shape: f32[16,98], index: 3, kind: output, shape index: {}]
  %s4 = sld [smem:[#allocation0]]
  $region22: #{vae_forward.8} parent=0
    _
  %s6 = ssub.s32 1, %s4
  %s7 = scalar_select 0, %s6, %s4
  // Predicated region
  $region2: #{vae_forward.8} parent=0 // pred_check
    _
  $region3: #{vae_forward.8} parent=0 // pred_check_branch
    %9 = sbr.rel (0) target = $region5
  $region4: #{vae_forward.8} parent=0 // pred_region
    _
  $region5: #{vae_forward.8} parent=0 // pred_fallthru
    _
  // Predicated region
  $region6: #{vae_forward.8} parent=0 // pred_check
    _
  $region7: #{vae_forward.8} parent=0 // pred_check_branch
    %11 = sbr.rel (0) target = $region9
  $region8: #{vae_forward.8} parent=0 // pred_region
    _
  $region9: #{vae_forward.8} parent=0 // pred_fallthru
    _
  // Predicated region
  $region10: #{vae_forward.8} parent=0 // pred_check
    _
  $region11: #{vae_forward.8} parent=0 // pred_check_branch
    %13 = sbr.rel (0) target = $region13
  $region12: #{vae_forward.8} parent=0 // pred_region
    _
  $region13: #{vae_forward.8} parent=0 // pred_fallthru
    _
  %v14 = vld [vmem:[%s0] sm:$0xff]
  %v15 = vld [vmem:[%s0 + $0x8] sm:$0xff]
  %v16 = vld [vmem:[%s1] sm:$0xff]
  %v17 = vld [vmem:[%s1 + $0x8] sm:$0xff]
  %v18 = vld [vmem:[%s1 + $0x10] sm:$0xff]
  %v19 = vld [vmem:[%s1 + $0x18] sm:$0xff]
  %v20 = vld [vmem:[%s1 + $0x20] sm:$0xf]
  %v21 = vld [vmem:[%s2] sm:$0xff]
  %v22 = vld [vmem:[%s2 + $0x8] sm:$0xff]
  %24 = vset.pattern.permute.xlu0 0
  %25 = vperm.xlu0 %24, %v21
  %v26 = vpop.permute.xlu0 %25
  %29 = vset.pattern.permute.xlu0 0
  %30 = vperm.xlu0 %29, %v22
  %v31 = vpop.permute.xlu0 %30
  %vm33 = vcmask 293888
  %v35 = vsel %vm33, %v14, 0
  %v38 = vsel %vm33, %v15, 0
  %vm40 = vcmask 1043456
  %v42 = vsel %vm40, %v20, 0
  %44 = vmatpush.msra.mxu0 0.0
  %45 = vmatpush.msra.mxu0 0.0
  %46 = vmatpush.msra.mxu0 0.0
  %47 = vmatpush.msra.mxu0 0.0
  %48 = vmatpush.msra.mxu0 0.0
  %49 = vmatpush.msra.mxu0 0.0
  %50 = vmatpush.msra.mxu0 0.0
  %51 = vmatpush.msra.mxu0 0.0
  %52 = vmatpush.msra.mxu0 0.0
  %53 = vmatpush.msra.mxu0 0.0
  %54 = vmatpush.msra.mxu0 0.0
  %55 = vmatpush.msra.mxu0 %v42
  %56 = vmatpush.msra.mxu0 %v19
  %57 = vmatpush.msra.mxu0 %v18
  %58 = vmatpush.msra.mxu0 %v17
  %59 = vmatpush.msra.mxu0 %v16
  %60 = vmatmul.f32.gmra.mxu0 %v35
  %v61 = vpop.f32.mrf.mxu0
  %v62 = vadd.f32 %v26, %v61
  %63 = vmatmul.f32.gmra.mxu0 %v38
  %v64 = vpop.f32.mrf.mxu0
  %v65 = vadd.f32 %v31, %v64
  %66 = vdwg.mxu0
  %v67 = vmax.f32 %v62, 0.0
  %v68 = vmax.f32 %v65, 0.0
  %vm69 = vcmask 801792
  %70 = vst.msk [vmem:[%s3] sm:$0xff] %vm69, %v67
  %71 = vst.msk [vmem:[%s3 + $0x8] sm:$0xff] %vm69, %v68
  // Predicated region
  $region14: #{vae_forward.8} parent=0 // pred_check
    _
  $region15: #{vae_forward.8} parent=0 // pred_check_branch
    %73 = sbr.rel (0) target = $region17
  $region16: #{vae_forward.8} parent=0 // pred_region
    _
  $region17: #{vae_forward.8} parent=0 // pred_fallthru
    _
  // Predicated region
  $region18: #{vae_forward.8} parent=0 // pred_check
    _
  $region19: #{vae_forward.8} parent=0 // pred_check_branch
    %75 = sbr.rel (0) target = $region21
  $region20: #{vae_forward.8} parent=0 // pred_region
    _
  $region21: #{vae_forward.8} parent=0 // pred_fallthru
    _

// kernel: tile.17
$region0: #{tile.17}
  #allocation0 [shape = 's32[1]{0}', space=sflag, size = 0x4, scoped, tag = 'scoped memory for tile.17']
  %s0 = inlined_call_operand.<no memory space> [shape: f32[], index: 0, kind: input, shape index: {}]
  %s1 = inlined_call_operand.vmem [shape: f32[4,1], index: 1, kind: output, shape index: {}]
  %v2 = vstv %s0
  %3 = vst [vmem:[%s1] sm:$0xf] %v2

// kernel: vae_forward.9
$region0: #{vae_forward.9}
  #allocation0 [shape = 'u32[]', space=smem, size = 0x4, offset = 0x4, fixed_abs, tag = 'smem constant byte address 0x4 - core index']
  #allocation1 [shape = 'u32[72,128]{1,0:T(1,128)}', space=vmem, size = 0x9000, scoped, tag = 'internal scratch']
  %s0 = inlined_call_operand.vmem [shape: f32[4,36], index: 0, kind: input, shape index: {}]
  %s1 = inlined_call_operand.vmem [shape: f32[36,392], index: 1, kind: input, shape index: {}]
  %s2 = inlined_call_operand.vmem [shape: f32[4,1], index: 2, kind: input, shape index: {}]
  %s3 = inlined_call_operand.vmem [shape: f32[4,392], index: 3, kind: output, shape index: {}]
  %s4 = sld [smem:[#allocation0]]
  $region22: #{vae_forward.9} parent=0
    _
  %s6 = ssub.s32 1, %s4
  %s7 = scalar_select 0, %s6, %s4
  // Predicated region
  $region2: #{vae_forward.9} parent=0 // pred_check
    _
  $region3: #{vae_forward.9} parent=0 // pred_check_branch
    %9 = sbr.rel (0) target = $region5
  $region4: #{vae_forward.9} parent=0 // pred_region
    _
  $region5: #{vae_forward.9} parent=0 // pred_fallthru
    _
  // Predicated region
  $region6: #{vae_forward.9} parent=0 // pred_check
    _
  $region7: #{vae_forward.9} parent=0 // pred_check_branch
    %11 = sbr.rel (0) target = $region9
  $region8: #{vae_forward.9} parent=0 // pred_region
    _
  $region9: #{vae_forward.9} parent=0 // pred_fallthru
    _
  // Predicated region
  $region10: #{vae_forward.9} parent=0 // pred_check
    _
  $region11: #{vae_forward.9} parent=0 // pred_check_branch
    %13 = sbr.rel (0) target = $region13
  $region12: #{vae_forward.9} parent=0 // pred_region
    _
  $region13: #{vae_forward.9} parent=0 // pred_fallthru
    _
  %v14 = vld [vmem:[%s0] sm:$0xf]
  %v15 = vld [vmem:[%s1] sm:$0xff]
  %v16 = vld [vmem:[%s1 + $0x8] sm:$0xff]
  %v17 = vld [vmem:[%s1 + $0x10] sm:$0xff]
  %v18 = vld [vmem:[%s1 + $0x18] sm:$0xff]
  %v19 = vld [vmem:[%s1 + $0x20] sm:$0xff]
  %v20 = vld [vmem:[%s1 + $0x28] sm:$0xff]
  %v21 = vld [vmem:[%s1 + $0x30] sm:$0xff]
  %v22 = vld [vmem:[%s1 + $0x38] sm:$0xff]
  %v23 = vld [vmem:[%s1 + $0x40] sm:$0xff]
  %v24 = vld [vmem:[%s1 + $0x48] sm:$0xff]
  %v25 = vld [vmem:[%s1 + $0x50] sm:$0xff]
  %v26 = vld [vmem:[%s1 + $0x58] sm:$0xff]
  %v27 = vld [vmem:[%s1 + $0x60] sm:$0xff]
  %v28 = vld [vmem:[%s1 + $0x68] sm:$0xff]
  %v29 = vld [vmem:[%s1 + $0x70] sm:$0xff]
  %v30 = vld [vmem:[%s1 + $0x78] sm:$0xff]
  %v31 = vld [vmem:[%s1 + $0x80] sm:$0xf]
  %v32 = vld [vmem:[%s1 + $0x88] sm:$0xf]
  %v33 = vld [vmem:[%s1 + $0x90] sm:$0xf]
  %v34 = vld [vmem:[%s1 + $0x98] sm:$0xf]
  %v35 = vld [vmem:[%s2] sm:$0xf]
  %37 = vset.pattern.permute.xlu0 0
  %38 = vperm.xlu0 %37, %v35
  %v39 = vpop.permute.xlu0 %38
  %vm41 = vcmask 293888
  %v43 = vsel %vm41, %v14, 0
  %vm45 = vcmask 1043456
  %v47 = vsel %vm45, %v31, 0
  %v50 = vsel %vm45, %v32, 0
  %v53 = vsel %vm45, %v33, 0
  %v56 = vsel %vm45, %v34, 0
  %58 = vmatpush.msra.mxu0 0.0
  %59 = vmatpush.msra.mxu0 0.0
  %60 = vmatpush.msra.mxu0 0.0
  %61 = vmatpush.msra.mxu0 0.0
  %62 = vmatpush.msra.mxu0 0.0
  %63 = vmatpush.msra.mxu0 0.0
  %64 = vmatpush.msra.mxu0 0.0
  %65 = vmatpush.msra.mxu0 0.0
  %66 = vmatpush.msra.mxu0 0.0
  %67 = vmatpush.msra.mxu0 0.0
  %68 = vmatpush.msra.mxu0 0.0
  %69 = vmatpush.msra.mxu0 %v47
  %70 = vmatpush.msra.mxu0 %v27
  %71 = vmatpush.msra.mxu0 %v23
  %72 = vmatpush.msra.mxu0 %v19
  %73 = vmatpush.msra.mxu0 %v15
  %74 = vmatmul.f32.gmra.mxu0 %v43
  %v75 = vpop.f32.mrf.mxu0
  %v76 = vadd.f32 %v39, %v75
  %77 = vdwg.mxu0
  %78 = vmatpush.msra.mxu0 0.0
  %79 = vmatpush.msra.mxu0 0.0
  %80 = vmatpush.msra.mxu0 0.0
  %81 = vmatpush.msra.mxu0 0.0
  %82 = vmatpush.msra.mxu0 0.0
  %83 = vmatpush.msra.mxu0 0.0
  %84 = vmatpush.msra.mxu0 0.0
  %85 = vmatpush.msra.mxu0 0.0
  %86 = vmatpush.msra.mxu0 0.0
  %87 = vmatpush.msra.mxu0 0.0
  %88 = vmatpush.msra.mxu0 0.0
  %89 = vmatpush.msra.mxu0 %v50
  %90 = vmatpush.msra.mxu0 %v28
  %91 = vmatpush.msra.mxu0 %v24
  %92 = vmatpush.msra.mxu0 %v20
  %93 = vmatpush.msra.mxu0 %v16
  %94 = vmatmul.f32.gmra.mxu0 %v43
  %v95 = vpop.f32.mrf.mxu0
  %v96 = vadd.f32 %v39, %v95
  %97 = vdwg.mxu0
  %98 = vmatpush.msra.mxu0 0.0
  %99 = vmatpush.msra.mxu0 0.0
  %100 = vmatpush.msra.mxu0 0.0
  %101 = vmatpush.msra.mxu0 0.0
  %102 = vmatpush.msra.mxu0 0.0
  %103 = vmatpush.msra.mxu0 0.0
  %104 = vmatpush.msra.mxu0 0.0
  %105 = vmatpush.msra.mxu0 0.0
  %106 = vmatpush.msra.mxu0 0.0
  %107 = vmatpush.msra.mxu0 0.0
  %108 = vmatpush.msra.mxu0 0.0
  %109 = vmatpush.msra.mxu0 %v53
  %110 = vmatpush.msra.mxu0 %v29
  %111 = vmatpush.msra.mxu0 %v25
  %112 = vmatpush.msra.mxu0 %v21
  %113 = vmatpush.msra.mxu0 %v17
  %114 = vmatmul.f32.gmra.mxu0 %v43
  %v115 = vpop.f32.mrf.mxu0
  %v116 = vadd.f32 %v39, %v115
  %117 = vdwg.mxu0
  %118 = vmatpush.msra.mxu0 0.0
  %119 = vmatpush.msra.mxu0 0.0
  %120 = vmatpush.msra.mxu0 0.0
  %121 = vmatpush.msra.mxu0 0.0
  %122 = vmatpush.msra.mxu0 0.0
  %123 = vmatpush.msra.mxu0 0.0
  %124 = vmatpush.msra.mxu0 0.0
  %125 = vmatpush.msra.mxu0 0.0
  %126 = vmatpush.msra.mxu0 0.0
  %127 = vmatpush.msra.mxu0 0.0
  %128 = vmatpush.msra.mxu0 0.0
  %129 = vmatpush.msra.mxu0 %v56
  %130 = vmatpush.msra.mxu0 %v30
  %131 = vmatpush.msra.mxu0 %v26
  %132 = vmatpush.msra.mxu0 %v22
  %133 = vmatpush.msra.mxu0 %v18
  %134 = vmatmul.f32.gmra.mxu0 %v43
  %v135 = vpop.f32.mrf.mxu0
  %v136 = vadd.f32 %v39, %v135
  %137 = vdwg.mxu0
  %v142 = vrot.slane %v96, 4
  %v143 = vrot.slane %v136, 4
  %v144 = vsel %vm45, %v76, %v142
  %v145 = vsel %vm45, %v116, %v143
  %148 = vst [vmem:[%s3] sm:$0xff] %v144
  %vm149 = vcmask 64516
  %vm150 = vmor %vm149, %vm45
  %151 = vst.msk [vmem:[%s3 + $0x8] sm:$0xff] %vm150, %v145
  // Predicated region
  $region14: #{vae_forward.9} parent=0 // pred_check
    _
  $region15: #{vae_forward.9} parent=0 // pred_check_branch
    %153 = sbr.rel (0) target = $region17
  $region16: #{vae_forward.9} parent=0 // pred_region
    _
  $region17: #{vae_forward.9} parent=0 // pred_fallthru
    _
  // Predicated region
  $region18: #{vae_forward.9} parent=0 // pred_check
    _
  $region19: #{vae_forward.9} parent=0 // pred_check_branch
    %155 = sbr.rel (0) target = $region21
  $region20: #{vae_forward.9} parent=0 // pred_region
    _
  $region21: #{vae_forward.9} parent=0 // pred_fallthru
    _

</llo_original>
